<compile_context>
chip_gen: v7x
topology: tpu7x:2x2x1
jax: 0.10.0
libtpu: 0.0.40
codegen_flags: <defaults>
</compile_context>

<pallas_src>
import jax
import jax.numpy as jnp
from jax import lax
from jax.experimental import pallas as pl
from jax.experimental.pallas import tpu as pltpu

LANE = 128                 # TPU lane width: channel axes are padded to this
K_SIZE = 5                 # Net: both convs use kernel_size=5
OC1, OC2, N_CLASSES = 10, 20, 10


def _round_up(x, m):
    return (x + m - 1) // m * m


def _pick_row_tile(m, max_tile=128):
    """Row-tile size: 128 when there is enough work, else the whole
    (8-aligned) row count so tiny problems stay a single grid step."""
    return max_tile if m >= max_tile else _round_up(m, 8)


# ---------------------------------------------------------------------------
# Pallas kernels
# ---------------------------------------------------------------------------
def _conv_pool_relu_kernel(p_ref, w_ref, b_ref, o_ref):
    """Fused conv + bias + maxpool(2) + relu for one row tile.

    p_ref: (4, tm, Kp)  im2col patches, leading axis = 2x2 pool-window offset
    w_ref: (Kp, 128)    padded weight matrix
    b_ref: (1, 128)     padded bias
    o_ref: (tm, 128)  = relu(max_over_window(p @ w) + b)   (lane-dense store)
    """
    w = w_ref[...]
    y = jnp.dot(p_ref[0], w, preferred_element_type=jnp.float32)
    y = jnp.maximum(y, jnp.dot(p_ref[1], w, preferred_element_type=jnp.float32))
    y = jnp.maximum(y, jnp.dot(p_ref[2], w, preferred_element_type=jnp.float32))
    y = jnp.maximum(y, jnp.dot(p_ref[3], w, preferred_element_type=jnp.float32))
    o_ref[...] = jnp.maximum(y + b_ref[...], 0.0)


def _matmul_bias_kernel(a_ref, w_ref, b_ref, o_ref):
    o_ref[...] = (
        jnp.dot(a_ref[...], w_ref[...], preferred_element_type=jnp.float32)
        + b_ref[...]
    )


# ---------------------------------------------------------------------------
# Pallas wrappers
# ---------------------------------------------------------------------------
def conv_pool_relu_block(x_nhwc, w_mat, b_row, k):
    """Fused Conv2d(k, stride 1, VALID) + bias + MaxPool2d(2) + ReLU.

    x_nhwc: (N, H, W, C) f32;  w_mat: (Kp, 128);  b_row: (1, 128)
    returns ((N*Hp*Wp, 128) f32 with rows ordered (n, hp, wp), (Hp, Wp)).
    Channels >= OC of the output are exactly zero.
    """
    N, H, W, C = x_nhwc.shape
    Ho, Wo = H - k + 1, W - k + 1
    assert Ho % 2 == 0 and Wo % 2 == 0
    Hp, Wp = Ho // 2, Wo // 2
    K = C * k * k
    Kp = w_mat.shape[0]

    # im2col in one fused XLA op (channel dim = flattened k*k*C patch).
    p = lax.conv_general_dilated_patches(
        x_nhwc, (k, k), (1, 1), "VALID",
        dimension_numbers=("NHWC", "HWIO", "NHWC"),
        precision=lax.Precision.HIGHEST)                      # (N, Ho, Wo, K)
    # Put the four 2x2 pool-window offsets on a leading axis of size 4,
    # rows ordered (n, hp, wp).
    p = p.reshape(N, Hp, 2, Wp, 2, K).transpose(2, 4, 0, 1, 3, 5)
    p = p.reshape(4, N * Hp * Wp, K)

    M = N * Hp * Wp
    tm = _pick_row_tile(M)
    Mp = _round_up(M, tm)
    p = jnp.pad(p, ((0, 0), (0, Mp - M), (0, Kp - K)))

    out = pl.pallas_call(
        _conv_pool_relu_kernel,
        out_shape=jax.ShapeDtypeStruct((Mp, LANE), jnp.float32),
        grid=(Mp // tm,),
        in_specs=[
            pl.BlockSpec((4, tm, Kp), lambda i: (0, i, 0)),
            pl.BlockSpec((Kp, LANE), lambda i: (0, 0)),
            pl.BlockSpec((1, LANE), lambda i: (0, 0)),
        ],
        out_specs=pl.BlockSpec((tm, LANE), lambda i: (i, 0)),
        compiler_params=pltpu.CompilerParams(
            dimension_semantics=("parallel",)),
    )(p, w_mat, b_row)
    return out[:M], (Hp, Wp)


def matmul_bias(a, w_mat, b_row):
    """a: (M, K) with K a multiple of 128; w_mat: (K, 128); b_row: (1, 128)."""
    M, K = a.shape
    tm = _pick_row_tile(M)
    Mp = _round_up(M, tm)
    a = jnp.pad(a, ((0, Mp - M), (0, 0)))
    out = pl.pallas_call(
        _matmul_bias_kernel,
        out_shape=jax.ShapeDtypeStruct((Mp, LANE), jnp.float32),
        grid=(Mp // tm,),
        in_specs=[
            pl.BlockSpec((tm, K), lambda i: (i, 0)),
            pl.BlockSpec((K, LANE), lambda i: (0, 0)),
            pl.BlockSpec((1, LANE), lambda i: (0, 0)),
        ],
        out_specs=pl.BlockSpec((tm, LANE), lambda i: (i, 0)),
        compiler_params=pltpu.CompilerParams(
            dimension_semantics=("parallel",)),
    )(a, w_mat, b_row)
    return out[:M]


# ---------------------------------------------------------------------------
# One-time parameter preparation (outside the per-step forward)
# ---------------------------------------------------------------------------
def _conv_weight_matrix(w):
    """(OC, C, k, k) torch OIHW -> (round_up(C*k*k, 128), 128) padded matrix.

    Row order is made to match lax.conv_general_dilated_patches *exactly* by
    running the same patch extraction on the kernel itself."""
    OC, C, k, _ = w.shape
    K = C * k * k
    w_rows = lax.conv_general_dilated_patches(
        jnp.transpose(w, (0, 2, 3, 1)),            # (OC, k, k, C) as N,H,W,C
        (k, k), (1, 1), "VALID",
        dimension_numbers=("NHWC", "HWIO", "NHWC"),
        precision=lax.Precision.HIGHEST).reshape(OC, K)
    Kp = _round_up(K, LANE)
    return jnp.pad(w_rows.T, ((0, Kp - K), (0, LANE - OC)))


def _pad_bias(b):
    return jnp.pad(b.reshape(1, -1), ((0, 0), (0, LANE - b.shape[0])))


def prepare_params(params):
    """Massage PyTorch-layout parameters into padded, lane-dense matrices."""
    w1, b1, w2, b2, wfc, bfc = params
    # torch flattens the fc input NCHW -> (c, h, w); our activation flattens
    # (h, w, padded-c).  Permute + pad the fc weight to match, so no activation
    # transpose / channel slice is needed before the final matmul.
    hw = wfc.shape[1] // OC2                       # 16
    hp = int(round(hw ** 0.5))                     # 4
    wfc_t = wfc.reshape(N_CLASSES, OC2, hp, hp).transpose(2, 3, 1, 0)  # (h,w,c,oc)
    wfc_t = jnp.pad(wfc_t, ((0, 0), (0, 0),
                            (0, LANE - OC2), (0, LANE - N_CLASSES)))
    wfc_mat = wfc_t.reshape(hp * hp * LANE, LANE)                      # (2048,128)
    return dict(
        w1=_conv_weight_matrix(w1), b1=_pad_bias(b1),
        w2=_conv_weight_matrix(w2), b2=_pad_bias(b2),
        wfc=wfc_mat, bfc=_pad_bias(bfc),
    )


# ---------------------------------------------------------------------------
# Net.forward
# ---------------------------------------------------------------------------
def net_forward(x, prep):
    """x: (N, 1, 28, 28) NCHW float32 (PyTorch layout) -> (N, 10) logits."""
    N = x.shape[0]
    x_nhwc = jnp.transpose(x, (0, 2, 3, 1))                        # (N,28,28,1)

    a1, (hp1, wp1) = conv_pool_relu_block(x_nhwc, prep["w1"], prep["b1"], K_SIZE)
    act1 = a1.reshape(N, hp1, wp1, LANE)[..., :OC1]                # (N,12,12,10)

    a2, (hp2, wp2) = conv_pool_relu_block(act1, prep["w2"], prep["b2"], K_SIZE)
    # rows are (n, hp, wp), lanes are padded channels -> contiguous flatten.
    fc_in = a2.reshape(N, hp2 * wp2 * LANE)                        # (N, 2048)

    logits = matmul_bias(fc_in, prep["wfc"], prep["bfc"])          # (N, 128)
    return logits[:, :N_CLASSES]


# ---------------------------------------------------------------------------
# Pure-JAX reference (numerical sanity check)
# ---------------------------------------------------------------------------
def net_forward_ref(x, params):
    w1, b1, w2, b2, wfc, bfc = params

    def conv(x, w, b):
        y = lax.conv_general_dilated(
            x, w, (1, 1), "VALID",
            dimension_numbers=("NCHW", "OIHW", "NCHW"),
            precision=lax.Precision.HIGHEST)
        return y + b[None, :, None, None]

    def pool_relu(x):
        y = lax.reduce_window(x, -jnp.inf, lax.max,
                              (1, 1, 2, 2), (1, 1, 2, 2), "VALID")
        return jnp.maximum(y, 0.0)

    h = pool_relu(conv(x, w1, b1))
    h = pool_relu(conv(h, w2, b2))
    h = h.reshape(x.shape[0], -1)
    return h @ wfc.T + bfc


# ---------------------------------------------------------------------------
if __name__ == "__main__":
    key = jax.random.PRNGKey(0)
    ks = jax.random.split(key, 7)

    N = 2
    x = jax.random.normal(ks[0], (N, 1, 28, 28), jnp.float32)

    # Deterministic synthetic parameters (shapes from Net.__init__).
    w1 = jax.random.normal(ks[1], (10, 1, 5, 5), jnp.float32) * 0.2
    b1 = jax.random.normal(ks[2], (10,), jnp.float32) * 0.1
    w2 = jax.random.normal(ks[3], (20, 10, 5, 5), jnp.float32) * 0.1
    b2 = jax.random.normal(ks[4], (20,), jnp.float32) * 0.1
    wfc = jax.random.normal(ks[5], (10, 320), jnp.float32) * 0.05
    bfc = jax.random.normal(ks[6], (10,), jnp.float32) * 0.1
    params = (w1, b1, w2, b2, wfc, bfc)

    prep = jax.tree_util.tree_map(jax.block_until_ready,
                                  prepare_params(params))   # one-time prep

    out = jax.block_until_ready(jax.jit(net_forward)(x, prep))
    assert out.shape == (N, 10) and out.dtype == jnp.float32

    ref = jax.block_until_ready(jax.jit(net_forward_ref)(x, params))
    assert jnp.allclose(out, ref, rtol=1e-2, atol=1e-2), "mismatch vs reference"

    print("KERNEL_OK")
</pallas_src>

<mosaic_0001>
module attributes {stable_mosaic.version = 11 : i64} {
  func.func @_conv_pool_relu_kernel(%arg0: i32, %arg1: memref<4x128x128xf32, #tpu.memory_space<vmem>>, %arg2: memref<128x128xf32, #tpu.memory_space<vmem>>, %arg3: memref<1x128xf32, #tpu.memory_space<vmem>>, %arg4: memref<128x128xf32, #tpu.memory_space<vmem>>) attributes {dimension_semantics = [#tpu.dimension_semantics<parallel>], iteration_bounds = array<i64: 3>, scalar_prefetch = 0 : i64, scratch_operands = 0 : i64, tpu.core_type = #tpu.core_type<tc>, window_params = [{transform_indices = @transform_0, window_bounds = array<i64: 4, 128, 128>}, {pipeline_mode = #tpu.pipeline_mode<synchronous>, transform_indices = @transform_1, window_bounds = array<i64: 128, 128>}, {pipeline_mode = #tpu.pipeline_mode<synchronous>, transform_indices = @transform_2, window_bounds = array<i64: 1, 128>}, {transform_indices = @transform_3, window_bounds = array<i64: 128, 128>}]} {
    %c0 = arith.constant 0 : index
    %c0_0 = arith.constant 0 : index
    %0 = vector.load %arg2[%c0, %c0_0] : memref<128x128xf32, #tpu.memory_space<vmem>>, vector<128x128xf32>
    %c0_1 = arith.constant 0 : index
    %c0_2 = arith.constant 0 : index
    %c0_3 = arith.constant 0 : index
    %1 = vector.load %arg1[%c0_1, %c0_2, %c0_3] : memref<4x128x128xf32, #tpu.memory_space<vmem>>, vector<1x128x128xf32>
    %2 = vector.shape_cast %1 : vector<1x128x128xf32> to vector<128x128xf32>
    %cst = arith.constant dense<0.000000e+00> : vector<128x128xf32>
    %3 = tpu.matmul %2, %0, %cst {dimension_numbers = #tpu.dot_dimension_numbers<[1], [0], [0], [1], [0, 0, 1, 1], [], []>} : vector<128x128xf32>, vector<128x128xf32>, vector<128x128xf32> -> vector<128x128xf32>
    %c1 = arith.constant 1 : index
    %c0_4 = arith.constant 0 : index
    %c0_5 = arith.constant 0 : index
    %4 = vector.load %arg1[%c1, %c0_4, %c0_5] : memref<4x128x128xf32, #tpu.memory_space<vmem>>, vector<1x128x128xf32>
    %5 = vector.shape_cast %4 : vector<1x128x128xf32> to vector<128x128xf32>
    %cst_6 = arith.constant dense<0.000000e+00> : vector<128x128xf32>
    %6 = tpu.matmul %5, %0, %cst_6 {dimension_numbers = #tpu.dot_dimension_numbers<[1], [0], [0], [1], [0, 0, 1, 1], [], []>} : vector<128x128xf32>, vector<128x128xf32>, vector<128x128xf32> -> vector<128x128xf32>
    %7 = arith.maximumf %3, %6 : vector<128x128xf32>
    %c2 = arith.constant 2 : index
    %c0_7 = arith.constant 0 : index
    %c0_8 = arith.constant 0 : index
    %8 = vector.load %arg1[%c2, %c0_7, %c0_8] : memref<4x128x128xf32, #tpu.memory_space<vmem>>, vector<1x128x128xf32>
    %9 = vector.shape_cast %8 : vector<1x128x128xf32> to vector<128x128xf32>
    %cst_9 = arith.constant dense<0.000000e+00> : vector<128x128xf32>
    %10 = tpu.matmul %9, %0, %cst_9 {dimension_numbers = #tpu.dot_dimension_numbers<[1], [0], [0], [1], [0, 0, 1, 1], [], []>} : vector<128x128xf32>, vector<128x128xf32>, vector<128x128xf32> -> vector<128x128xf32>
    %11 = arith.maximumf %7, %10 : vector<128x128xf32>
    %c3 = arith.constant 3 : index
    %c0_10 = arith.constant 0 : index
    %c0_11 = arith.constant 0 : index
    %12 = vector.load %arg1[%c3, %c0_10, %c0_11] : memref<4x128x128xf32, #tpu.memory_space<vmem>>, vector<1x128x128xf32>
    %13 = vector.shape_cast %12 : vector<1x128x128xf32> to vector<128x128xf32>
    %cst_12 = arith.constant dense<0.000000e+00> : vector<128x128xf32>
    %14 = tpu.matmul %13, %0, %cst_12 {dimension_numbers = #tpu.dot_dimension_numbers<[1], [0], [0], [1], [0, 0, 1, 1], [], []>} : vector<128x128xf32>, vector<128x128xf32>, vector<128x128xf32> -> vector<128x128xf32>
    %15 = arith.maximumf %11, %14 : vector<128x128xf32>
    %c0_13 = arith.constant 0 : index
    %c0_14 = arith.constant 0 : index
    %16 = vector.load %arg3[%c0_13, %c0_14] : memref<1x128xf32, #tpu.memory_space<vmem>>, vector<1x128xf32>
    %17 = vector.broadcast %16 : vector<1x128xf32> to vector<128x128xf32>
    %18 = arith.addf %15, %17 : vector<128x128xf32>
    %cst_15 = arith.constant 0.000000e+00 : f32
    %19 = vector.broadcast %cst_15 : f32 to vector<128x128xf32>
    %20 = arith.maximumf %18, %19 : vector<128x128xf32>
    %c0_16 = arith.constant 0 : index
    %c0_17 = arith.constant 0 : index
    %21 = vector.load %arg4[%c0_16, %c0_17] : memref<128x128xf32, #tpu.memory_space<vmem>>, vector<128x128xf32>
    tpu.vector_store %arg4[%c0_16, %c0_17], %20 {strides = array<i32>} : memref<128x128xf32, #tpu.memory_space<vmem>>, vector<128x128xf32>,
    return
  }
  func.func @transform_0(%arg0: i32) -> (i32, i32, i32) {
    %c0_i32 = arith.constant 0 : i32
    %c0_i32_0 = arith.constant 0 : i32
    %c0_i32_1 = arith.constant 0 : i32
    return %c0_i32, %arg0, %c0_i32_0 : i32, i32, i32
  }
  func.func @transform_1(%arg0: i32) -> (i32, i32) {
    %c0_i32 = arith.constant 0 : i32
    %c0_i32_0 = arith.constant 0 : i32
    %c0_i32_1 = arith.constant 0 : i32
    return %c0_i32, %c0_i32_0 : i32, i32
  }
  func.func @transform_2(%arg0: i32) -> (i32, i32) {
    %c0_i32 = arith.constant 0 : i32
    %c0_i32_0 = arith.constant 0 : i32
    %c0_i32_1 = arith.constant 0 : i32
    return %c0_i32, %c0_i32_0 : i32, i32
  }
  func.func @transform_3(%arg0: i32) -> (i32, i32) {
    %c0_i32 = arith.constant 0 : i32
    %c0_i32_0 = arith.constant 0 : i32
    return %arg0, %c0_i32 : i32, i32
  }
}

module attributes {stable_mosaic.version = 11 : i64} {
  func.func @_conv_pool_relu_kernel(%arg0: i32, %arg1: memref<4x32x256xf32, #tpu.memory_space<vmem>>, %arg2: memref<256x128xf32, #tpu.memory_space<vmem>>, %arg3: memref<1x128xf32, #tpu.memory_space<vmem>>, %arg4: memref<32x128xf32, #tpu.memory_space<vmem>>) attributes {dimension_semantics = [#tpu.dimension_semantics<parallel>], iteration_bounds = array<i64: 1>, scalar_prefetch = 0 : i64, scratch_operands = 0 : i64, tpu.core_type = #tpu.core_type<tc>, window_params = [{transform_indices = @transform_0, window_bounds = array<i64: 4, 32, 256>}, {pipeline_mode = #tpu.pipeline_mode<synchronous>, transform_indices = @transform_1, window_bounds = array<i64: 256, 128>}, {pipeline_mode = #tpu.pipeline_mode<synchronous>, transform_indices = @transform_2, window_bounds = array<i64: 1, 128>}, {transform_indices = @transform_3, window_bounds = array<i64: 32, 128>}]} {
    %c0 = arith.constant 0 : index
    %c0_0 = arith.constant 0 : index
    %0 = vector.load %arg2[%c0, %c0_0] : memref<256x128xf32, #tpu.memory_space<vmem>>, vector<256x128xf32>
    %c0_1 = arith.constant 0 : index
    %c0_2 = arith.constant 0 : index
    %c0_3 = arith.constant 0 : index
    %1 = vector.load %arg1[%c0_1, %c0_2, %c0_3] : memref<4x32x256xf32, #tpu.memory_space<vmem>>, vector<1x32x256xf32>
    %2 = vector.shape_cast %1 : vector<1x32x256xf32> to vector<32x256xf32>
    %cst = arith.constant dense<0.000000e+00> : vector<32x128xf32>
    %3 = tpu.matmul %2, %0, %cst {dimension_numbers = #tpu.dot_dimension_numbers<[1], [0], [0], [1], [0, 0, 1, 1], [], []>} : vector<32x256xf32>, vector<256x128xf32>, vector<32x128xf32> -> vector<32x128xf32>
    %c1 = arith.constant 1 : index
    %c0_4 = arith.constant 0 : index
    %c0_5 = arith.constant 0 : index
    %4 = vector.load %arg1[%c1, %c0_4, %c0_5] : memref<4x32x256xf32, #tpu.memory_space<vmem>>, vector<1x32x256xf32>
    %5 = vector.shape_cast %4 : vector<1x32x256xf32> to vector<32x256xf32>
    %cst_6 = arith.constant dense<0.000000e+00> : vector<32x128xf32>
    %6 = tpu.matmul %5, %0, %cst_6 {dimension_numbers = #tpu.dot_dimension_numbers<[1], [0], [0], [1], [0, 0, 1, 1], [], []>} : vector<32x256xf32>, vector<256x128xf32>, vector<32x128xf32> -> vector<32x128xf32>
    %7 = arith.maximumf %3, %6 : vector<32x128xf32>
    %c2 = arith.constant 2 : index
    %c0_7 = arith.constant 0 : index
    %c0_8 = arith.constant 0 : index
    %8 = vector.load %arg1[%c2, %c0_7, %c0_8] : memref<4x32x256xf32, #tpu.memory_space<vmem>>, vector<1x32x256xf32>
    %9 = vector.shape_cast %8 : vector<1x32x256xf32> to vector<32x256xf32>
    %cst_9 = arith.constant dense<0.000000e+00> : vector<32x128xf32>
    %10 = tpu.matmul %9, %0, %cst_9 {dimension_numbers = #tpu.dot_dimension_numbers<[1], [0], [0], [1], [0, 0, 1, 1], [], []>} : vector<32x256xf32>, vector<256x128xf32>, vector<32x128xf32> -> vector<32x128xf32>
    %11 = arith.maximumf %7, %10 : vector<32x128xf32>
    %c3 = arith.constant 3 : index
    %c0_10 = arith.constant 0 : index
    %c0_11 = arith.constant 0 : index
    %12 = vector.load %arg1[%c3, %c0_10, %c0_11] : memref<4x32x256xf32, #tpu.memory_space<vmem>>, vector<1x32x256xf32>
    %13 = vector.shape_cast %12 : vector<1x32x256xf32> to vector<32x256xf32>
    %cst_12 = arith.constant dense<0.000000e+00> : vector<32x128xf32>
    %14 = tpu.matmul %13, %0, %cst_12 {dimension_numbers = #tpu.dot_dimension_numbers<[1], [0], [0], [1], [0, 0, 1, 1], [], []>} : vector<32x256xf32>, vector<256x128xf32>, vector<32x128xf32> -> vector<32x128xf32>
    %15 = arith.maximumf %11, %14 : vector<32x128xf32>
    %c0_13 = arith.constant 0 : index
    %c0_14 = arith.constant 0 : index
    %16 = vector.load %arg3[%c0_13, %c0_14] : memref<1x128xf32, #tpu.memory_space<vmem>>, vector<1x128xf32>
    %17 = vector.broadcast %16 : vector<1x128xf32> to vector<32x128xf32>
    %18 = arith.addf %15, %17 : vector<32x128xf32>
    %cst_15 = arith.constant 0.000000e+00 : f32
    %19 = vector.broadcast %cst_15 : f32 to vector<32x128xf32>
    %20 = arith.maximumf %18, %19 : vector<32x128xf32>
    %c0_16 = arith.constant 0 : index
    %c0_17 = arith.constant 0 : index
    %21 = vector.load %arg4[%c0_16, %c0_17] : memref<32x128xf32, #tpu.memory_space<vmem>>, vector<32x128xf32>
    tpu.vector_store %arg4[%c0_16, %c0_17], %20 {strides = array<i32>} : memref<32x128xf32, #tpu.memory_space<vmem>>, vector<32x128xf32>,
    return
  }
  func.func @transform_0(%arg0: i32) -> (i32, i32, i32) {
    %c0_i32 = arith.constant 0 : i32
    %c0_i32_0 = arith.constant 0 : i32
    %c0_i32_1 = arith.constant 0 : i32
    return %c0_i32, %arg0, %c0_i32_0 : i32, i32, i32
  }
  func.func @transform_1(%arg0: i32) -> (i32, i32) {
    %c0_i32 = arith.constant 0 : i32
    %c0_i32_0 = arith.constant 0 : i32
    %c0_i32_1 = arith.constant 0 : i32
    return %c0_i32, %c0_i32_0 : i32, i32
  }
  func.func @transform_2(%arg0: i32) -> (i32, i32) {
    %c0_i32 = arith.constant 0 : i32
    %c0_i32_0 = arith.constant 0 : i32
    %c0_i32_1 = arith.constant 0 : i32
    return %c0_i32, %c0_i32_0 : i32, i32
  }
  func.func @transform_3(%arg0: i32) -> (i32, i32) {
    %c0_i32 = arith.constant 0 : i32
    %c0_i32_0 = arith.constant 0 : i32
    return %arg0, %c0_i32 : i32, i32
  }
}

module attributes {stable_mosaic.version = 11 : i64} {
  func.func @_matmul_bias_kernel(%arg0: i32, %arg1: memref<8x2048xf32, #tpu.memory_space<vmem>>, %arg2: memref<2048x128xf32, #tpu.memory_space<vmem>>, %arg3: memref<1x128xf32, #tpu.memory_space<vmem>>, %arg4: memref<8x128xf32, #tpu.memory_space<vmem>>) attributes {dimension_semantics = [#tpu.dimension_semantics<parallel>], iteration_bounds = array<i64: 1>, scalar_prefetch = 0 : i64, scratch_operands = 0 : i64, tpu.core_type = #tpu.core_type<tc>, window_params = [{transform_indices = @transform_0, window_bounds = array<i64: 8, 2048>}, {pipeline_mode = #tpu.pipeline_mode<synchronous>, transform_indices = @transform_1, window_bounds = array<i64: 2048, 128>}, {pipeline_mode = #tpu.pipeline_mode<synchronous>, transform_indices = @transform_2, window_bounds = array<i64: 1, 128>}, {transform_indices = @transform_3, window_bounds = array<i64: 8, 128>}]} {
    %c0 = arith.constant 0 : index
    %c0_0 = arith.constant 0 : index
    %0 = vector.load %arg1[%c0, %c0_0] : memref<8x2048xf32, #tpu.memory_space<vmem>>, vector<8x2048xf32>
    %c0_1 = arith.constant 0 : index
    %c0_2 = arith.constant 0 : index
    %1 = vector.load %arg2[%c0_1, %c0_2] : memref<2048x128xf32, #tpu.memory_space<vmem>>, vector<2048x128xf32>
    %cst = arith.constant dense<0.000000e+00> : vector<8x128xf32>
    %2 = tpu.matmul %0, %1, %cst {dimension_numbers = #tpu.dot_dimension_numbers<[1], [0], [0], [1], [0, 0, 1, 1], [], []>} : vector<8x2048xf32>, vector<2048x128xf32>, vector<8x128xf32> -> vector<8x128xf32>
    %c0_3 = arith.constant 0 : index
    %c0_4 = arith.constant 0 : index
    %3 = vector.load %arg3[%c0_3, %c0_4] : memref<1x128xf32, #tpu.memory_space<vmem>>, vector<1x128xf32>
    %4 = vector.broadcast %3 : vector<1x128xf32> to vector<8x128xf32>
    %5 = arith.addf %2, %4 : vector<8x128xf32>
    %c0_5 = arith.constant 0 : index
    %c0_6 = arith.constant 0 : index
    %6 = vector.load %arg4[%c0_5, %c0_6] : memref<8x128xf32, #tpu.memory_space<vmem>>, vector<8x128xf32>
    tpu.vector_store %arg4[%c0_5, %c0_6], %5 {strides = array<i32>} : memref<8x128xf32, #tpu.memory_space<vmem>>, vector<8x128xf32>,
    return
  }
  func.func @transform_0(%arg0: i32) -> (i32, i32) {
    %c0_i32 = arith.constant 0 : i32
    %c0_i32_0 = arith.constant 0 : i32
    return %arg0, %c0_i32 : i32, i32
  }
  func.func @transform_1(%arg0: i32) -> (i32, i32) {
    %c0_i32 = arith.constant 0 : i32
    %c0_i32_0 = arith.constant 0 : i32
    %c0_i32_1 = arith.constant 0 : i32
    return %c0_i32, %c0_i32_0 : i32, i32
  }
  func.func @transform_2(%arg0: i32) -> (i32, i32) {
    %c0_i32 = arith.constant 0 : i32
    %c0_i32_0 = arith.constant 0 : i32
    %c0_i32_1 = arith.constant 0 : i32
    return %c0_i32, %c0_i32_0 : i32, i32
  }
  func.func @transform_3(%arg0: i32) -> (i32, i32) {
    %c0_i32 = arith.constant 0 : i32
    %c0_i32_0 = arith.constant 0 : i32
    return %arg0, %c0_i32 : i32, i32
  }
}

</mosaic_0001>

<llo_original>
// kernel: net_forward.3
$region0: #{net_forward.3}
  #allocation0 [shape = 'u32[]', space=smem, size = 0x4, offset = 0x4, fixed_abs, tag = 'smem constant byte address 0x4 - core index']
  #allocation1 [shape = 'u32[144,128]{1,0:T(1,128)}', space=vmem, size = 0x12000, scoped, tag = 'internal scratch']
  %s0 = inlined_call_operand.vmem [shape: f32[4,384,128], index: 0, kind: input, shape index: {}]
  %s1 = inlined_call_operand.vmem [shape: f32[128,128], index: 1, kind: input, shape index: {}]
  %s2 = inlined_call_operand.vmem [shape: f32[1,128], index: 2, kind: input, shape index: {}]
  %s3 = inlined_call_operand.vmem [shape: f32[384,128], index: 3, kind: output, shape index: {}]
  %s4 = sld [smem:[#allocation0]]
  $region83: #{net_forward.3} parent=0
    _
  %s6 = ssub.s32 1, %s4
  %s7 = scalar_select 0, %s6, %s4
  $region1: #{net_forward.3} parent=0
    #allocation2 [shape = 'u8[524288]{0}', space=vmem, size = 0x80000, scoped, tag = 'input window, operand 0']
    loop: start=0, step=1, limit=5
    $region2: #{net_forward.3} parent=1 // loop_pre_header
      _
    $region3: #{net_forward.3} parent=1 // loop_header
      %s9 = sphi 0, %s13
      %p10 = scmp.ge.s32.totalorder %s9, 5
      %s19 = sphi 0, %s21
      %s22 = sphi 0, %s19
      %s23 = sphi 0, %s22
      %s39 = sphi 0, %s23
      %s43 = sphi 0, %s43
      %s45 = sphi 0, %s43
      %s46 = sphi 0, %s45
      %s60 = sphi 0, %s46
      %s64 = sphi 0, %s64
      %s66 = sphi 0, %s64
      %s67 = sphi 0, %s66
      %s81 = sphi 0, %s67
      %s87 = sphi 0, %s89
      %s90 = sphi 0, %s87
      %s91 = sphi 0, %s90
      %s107 = sphi 0, %s91
    $region4: #{net_forward.3} parent=1 // loop_header_branch
      %12 = sbr.rel (%p10) target = $region8
    $region5: #{net_forward.3} parent=1 // loop_body
      %s14 = ssub.s32 %s9, 1
      %s15 = ssub.s32 %s9, 2
      %s16 = sadd.s32 %s9, 1
      %s17 = ssub.s32 %s9, %s16
      %p18 = scmp.eq.s32.totalorder %s17, 0
      %s20 = sadd.s32 %s19, 1
      %s21 = scalar_select %p18, %s19, %s20
      %p24 = pneg %p18
      %p25 = scmp.eq.s32.totalorder %s9, 2
      %p26 = por %p24, %p25
      %p27 = scmp.ne.s32.totalorder %s19, %s22
      %p28 = scmp.eq.s32.totalorder %s9, 0
      %p29 = por %p27, %p28
      %p30 = scmp.ne.s32.totalorder %s19, %s22
      %p31 = scmp.eq.s32.totalorder %s14, 2
      %p32 = por %p30, %p31
      %p33 = scmp.ne.s32.totalorder %s22, %s23
      %p34 = scmp.eq.s32.totalorder %s14, 0
      %p35 = por %p33, %p34
      %p36 = scmp.ne.s32.totalorder %s22, %s23
      %p37 = scmp.eq.s32.totalorder %s15, 2
      %p38 = por %p36, %p37
      %p40 = scmp.ne.s32.totalorder %s23, %s39
      %p41 = scmp.eq.s32.totalorder %s15, 0
      %p42 = por %p40, %p41
      %s44 = sadd.s32 %s43, 1
      %p47 = scmp.eq.s32.totalorder %s9, 2
      %p48 = scmp.ne.s32.totalorder %s43, %s45
      %p49 = scmp.eq.s32.totalorder %s9, 0
      %p50 = por %p48, %p49
      %p51 = scmp.ne.s32.totalorder %s43, %s45
      %p52 = scmp.eq.s32.totalorder %s14, 2
      %p53 = por %p51, %p52
      %p54 = scmp.ne.s32.totalorder %s45, %s46
      %p55 = scmp.eq.s32.totalorder %s14, 0
      %p56 = por %p54, %p55
      %p57 = scmp.ne.s32.totalorder %s45, %s46
      %p58 = scmp.eq.s32.totalorder %s15, 2
      %p59 = por %p57, %p58
      %p61 = scmp.ne.s32.totalorder %s46, %s60
      %p62 = scmp.eq.s32.totalorder %s15, 0
      %p63 = por %p61, %p62
      %s65 = sadd.s32 %s64, 1
      %p68 = scmp.eq.s32.totalorder %s9, 2
      %p69 = scmp.ne.s32.totalorder %s64, %s66
      %p70 = scmp.eq.s32.totalorder %s9, 0
      %p71 = por %p69, %p70
      %p72 = scmp.ne.s32.totalorder %s64, %s66
      %p73 = scmp.eq.s32.totalorder %s14, 2
      %p74 = por %p72, %p73
      %p75 = scmp.ne.s32.totalorder %s66, %s67
      %p76 = scmp.eq.s32.totalorder %s14, 0
      %p77 = por %p75, %p76
      %p78 = scmp.ne.s32.totalorder %s66, %s67
      %p79 = scmp.eq.s32.totalorder %s15, 2
      %p80 = por %p78, %p79
      %p82 = scmp.ne.s32.totalorder %s67, %s81
      %p83 = scmp.eq.s32.totalorder %s15, 0
      %p84 = por %p82, %p83
      %s85 = ssub.s32 %s9, %s16
      %p86 = scmp.eq.s32.totalorder %s85, 0
      %s88 = sadd.s32 %s87, 1
      %s89 = scalar_select %p86, %s87, %s88
      %p92 = pneg %p86
      %p93 = scmp.eq.s32.totalorder %s9, 2
      %p94 = por %p92, %p93
      %p95 = scmp.ne.s32.totalorder %s87, %s90
      %p96 = scmp.eq.s32.totalorder %s9, 0
      %p97 = por %p95, %p96
      %p98 = scmp.ne.s32.totalorder %s87, %s90
      %p99 = scmp.eq.s32.totalorder %s14, 2
      %p100 = por %p98, %p99
      %p101 = scmp.ne.s32.totalorder %s90, %s91
      %p102 = scmp.eq.s32.totalorder %s14, 0
      %p103 = por %p101, %p102
      %p104 = scmp.ne.s32.totalorder %s90, %s91
      %p105 = scmp.eq.s32.totalorder %s15, 2
      %p106 = por %p104, %p105
      %p108 = scmp.ne.s32.totalorder %s91, %s107
      %p109 = scmp.eq.s32.totalorder %s15, 0
      %p110 = por %p108, %p109
      %p111 = scmp.le.s32.totalorder 1, %s9
      %p112 = scmp.lt.s32.totalorder %s9, 4
      %p113 = pnand %p111, %p112
      %p114 = pneg %p113
      // Predicated region
      $region9: #{net_forward.3} parent=5 // pred_check
        _
      $region10: #{net_forward.3} parent=5 // pred_check_branch
        %116 = sbr.rel (%p113) target = $region12
      $region11: #{net_forward.3} parent=5 // pred_region
        %s117 = ssub.s32 %s9, 1
        // Predicated region
        $region13: #{net_forward.3} parent=11 // pred_check
          %p118 = pneg %p56
        $region14: #{net_forward.3} parent=11 // pred_check_branch
          %120 = sbr.rel (%p118) target = $region16
        $region15: #{net_forward.3} parent=11 // pred_region
          _
        $region16: #{net_forward.3} parent=11 // pred_fallthru
          _
        // Predicated region
        $region17: #{net_forward.3} parent=11 // pred_check
          %p121 = pneg %p77
        $region18: #{net_forward.3} parent=11 // pred_check_branch
          %123 = sbr.rel (%p121) target = $region20
        $region19: #{net_forward.3} parent=11 // pred_region
          _
        $region20: #{net_forward.3} parent=11 // pred_fallthru
          _
      $region12: #{net_forward.3} parent=5 // pred_fallthru
        _
      %p124 = scmp.lt.s32.totalorder %s9, 3
      // Predicated region
      $region21: #{net_forward.3} parent=5 // pred_check
        %p125 = pneg %p124
      $region22: #{net_forward.3} parent=5 // pred_check_branch
        %127 = sbr.rel (%p125) target = $region24
      $region23: #{net_forward.3} parent=5 // pred_region
        // Predicated region
        $region25: #{net_forward.3} parent=23 // pred_check
          %p128 = pneg %p29
        $region26: #{net_forward.3} parent=23 // pred_check_branch
          %130 = sbr.rel (%p128) target = $region28
        $region27: #{net_forward.3} parent=23 // pred_region
          %s131 = sand.u32 %s19, 1
          %s132 = sand.u32 %s19, 1
          %s133 = smul.addr %s132, 512
          %s134 = scalar_lea.vmem [#allocation2], %s133
          %s135 = smul.u32 16, %s9
          %s136 = smul.addr %s135, 8
          %s137 = scalar_lea.vmem %s0, %s136
          // Predicated region
          $region29: #{net_forward.3} parent=27 // pred_check
            _
          $region30: #{net_forward.3} parent=27 // pred_check_branch
            %139 = sbr.rel (0) target = $region32
          $region31: #{net_forward.3} parent=27 // pred_region
            // Predicated region
            $region33: #{net_forward.3} parent=31 // pred_check
              _
            $region34: #{net_forward.3} parent=31 // pred_check_branch
              %141 = sbr.rel (0) target = $region36
            $region35: #{net_forward.3} parent=31 // pred_region
              // Predicated region
              $region48: #{net_forward.3} parent=35 // pred_check
                _
              $region49: #{net_forward.3} parent=35 // pred_check_branch
                %282 = sbr.rel (0) target = $region51
              $region50: #{net_forward.3} parent=35 // pred_region
                loop: start=0, step=1, limit=1
                $region52: #{net_forward.3} parent=50 // loop_pre_header
                  _
                $region53: #{net_forward.3} parent=50 // loop_header
                  %s284 = sphi 0, %s288
                  %p285 = scmp.ge.s32.totalorder %s284, 1
                  %s289 = sphi %s137, %s137
                  %s290 = sphi %s134, %s134
                $region54: #{net_forward.3} parent=50 // loop_header_branch
                  %287 = sbr.rel (%p285) target = $region58
                $region55: #{net_forward.3} parent=50 // loop_body
                  %v291 = vld [vmem:[%s289] sm:$0xff]
                  %292 = vst [vmem:[%s290] sm:$0xff] %v291
                  %v293 = vld [vmem:[%s289 + $0x8] sm:$0xff]
                  %294 = vst [vmem:[%s290 + $0x8] sm:$0xff] %v293
                  %v295 = vld [vmem:[%s289 + $0x10] sm:$0xff]
                  %296 = vst [vmem:[%s290 + $0x10] sm:$0xff] %v295
                  %v297 = vld [vmem:[%s289 + $0x18] sm:$0xff]
                  %298 = vst [vmem:[%s290 + $0x18] sm:$0xff] %v297
                  %v299 = vld [vmem:[%s289 + $0x20] sm:$0xff]
                  %300 = vst [vmem:[%s290 + $0x20] sm:$0xff] %v299
                  %v301 = vld [vmem:[%s289 + $0x28] sm:$0xff]
                  %302 = vst [vmem:[%s290 + $0x28] sm:$0xff] %v301
                  %v303 = vld [vmem:[%s289 + $0x30] sm:$0xff]
                  %304 = vst [vmem:[%s290 + $0x30] sm:$0xff] %v303
                  %v305 = vld [vmem:[%s289 + $0x38] sm:$0xff]
                  %306 = vst [vmem:[%s290 + $0x38] sm:$0xff] %v305
                  %v307 = vld [vmem:[%s289 + $0x40] sm:$0xff]
                  %308 = vst [vmem:[%s290 + $0x40] sm:$0xff] %v307
                  %v309 = vld [vmem:[%s289 + $0x48] sm:$0xff]
                  %310 = vst [vmem:[%s290 + $0x48] sm:$0xff] %v309
                  %v311 = vld [vmem:[%s289 + $0x50] sm:$0xff]
                  %312 = vst [vmem:[%s290 + $0x50] sm:$0xff] %v311
                  %v313 = vld [vmem:[%s289 + $0x58] sm:$0xff]
                  %314 = vst [vmem:[%s290 + $0x58] sm:$0xff] %v313
                  %v315 = vld [vmem:[%s289 + $0x60] sm:$0xff]
                  %316 = vst [vmem:[%s290 + $0x60] sm:$0xff] %v315
                  %v317 = vld [vmem:[%s289 + $0x68] sm:$0xff]
                  %318 = vst [vmem:[%s290 + $0x68] sm:$0xff] %v317
                  %v319 = vld [vmem:[%s289 + $0x70] sm:$0xff]
                  %320 = vst [vmem:[%s290 + $0x70] sm:$0xff] %v319
                  %v321 = vld [vmem:[%s289 + $0x78] sm:$0xff]
                  %322 = vst [vmem:[%s290 + $0x78] sm:$0xff] %v321
                  %v323 = vld [vmem:[%s289 + $0x180] sm:$0xff]
                  %324 = vst [vmem:[%s290 + $0x80] sm:$0xff] %v323
                  %v325 = vld [vmem:[%s289 + $0x188] sm:$0xff]
                  %326 = vst [vmem:[%s290 + $0x88] sm:$0xff] %v325
                  %v327 = vld [vmem:[%s289 + $0x190] sm:$0xff]
                  %328 = vst [vmem:[%s290 + $0x90] sm:$0xff] %v327
                  %v329 = vld [vmem:[%s289 + $0x198] sm:$0xff]
                  %330 = vst [vmem:[%s290 + $0x98] sm:$0xff] %v329
                  %v331 = vld [vmem:[%s289 + $0x1a0] sm:$0xff]
                  %332 = vst [vmem:[%s290 + $0xa0] sm:$0xff] %v331
                  %v333 = vld [vmem:[%s289 + $0x1a8] sm:$0xff]
                  %334 = vst [vmem:[%s290 + $0xa8] sm:$0xff] %v333
                  %v335 = vld [vmem:[%s289 + $0x1b0] sm:$0xff]
                  %336 = vst [vmem:[%s290 + $0xb0] sm:$0xff] %v335
                  %v337 = vld [vmem:[%s289 + $0x1b8] sm:$0xff]
                  %338 = vst [vmem:[%s290 + $0xb8] sm:$0xff] %v337
                  %v339 = vld [vmem:[%s289 + $0x1c0] sm:$0xff]
                  %340 = vst [vmem:[%s290 + $0xc0] sm:$0xff] %v339
                  %v341 = vld [vmem:[%s289 + $0x1c8] sm:$0xff]
                  %342 = vst [vmem:[%s290 + $0xc8] sm:$0xff] %v341
                  %v343 = vld [vmem:[%s289 + $0x1d0] sm:$0xff]
                  %344 = vst [vmem:[%s290 + $0xd0] sm:$0xff] %v343
                  %v345 = vld [vmem:[%s289 + $0x1d8] sm:$0xff]
                  %346 = vst [vmem:[%s290 + $0xd8] sm:$0xff] %v345
                  %v347 = vld [vmem:[%s289 + $0x1e0] sm:$0xff]
                  %348 = vst [vmem:[%s290 + $0xe0] sm:$0xff] %v347
                  %v349 = vld [vmem:[%s289 + $0x1e8] sm:$0xff]
                  %350 = vst [vmem:[%s290 + $0xe8] sm:$0xff] %v349
                  %v351 = vld [vmem:[%s289 + $0x1f0] sm:$0xff]
                  %352 = vst [vmem:[%s290 + $0xf0] sm:$0xff] %v351
                  %v353 = vld [vmem:[%s289 + $0x1f8] sm:$0xff]
                  %354 = vst [vmem:[%s290 + $0xf8] sm:$0xff] %v353
                  %v355 = vld [vmem:[%s289 + $0x300] sm:$0xff]
                  %356 = vst [vmem:[%s290 + $0x100] sm:$0xff] %v355
                  %v357 = vld [vmem:[%s289 + $0x308] sm:$0xff]
                  %358 = vst [vmem:[%s290 + $0x108] sm:$0xff] %v357
                  %v359 = vld [vmem:[%s289 + $0x310] sm:$0xff]
                  %360 = vst [vmem:[%s290 + $0x110] sm:$0xff] %v359
                  %v361 = vld [vmem:[%s289 + $0x318] sm:$0xff]
                  %362 = vst [vmem:[%s290 + $0x118] sm:$0xff] %v361
                  %v363 = vld [vmem:[%s289 + $0x320] sm:$0xff]
                  %364 = vst [vmem:[%s290 + $0x120] sm:$0xff] %v363
                  %v365 = vld [vmem:[%s289 + $0x328] sm:$0xff]
                  %366 = vst [vmem:[%s290 + $0x128] sm:$0xff] %v365
                  %v367 = vld [vmem:[%s289 + $0x330] sm:$0xff]
                  %368 = vst [vmem:[%s290 + $0x130] sm:$0xff] %v367
                  %v369 = vld [vmem:[%s289 + $0x338] sm:$0xff]
                  %370 = vst [vmem:[%s290 + $0x138] sm:$0xff] %v369
                  %v371 = vld [vmem:[%s289 + $0x340] sm:$0xff]
                  %372 = vst [vmem:[%s290 + $0x140] sm:$0xff] %v371
                  %v373 = vld [vmem:[%s289 + $0x348] sm:$0xff]
                  %374 = vst [vmem:[%s290 + $0x148] sm:$0xff] %v373
                  %v375 = vld [vmem:[%s289 + $0x350] sm:$0xff]
                  %376 = vst [vmem:[%s290 + $0x150] sm:$0xff] %v375
                  %v377 = vld [vmem:[%s289 + $0x358] sm:$0xff]
                  %378 = vst [vmem:[%s290 + $0x158] sm:$0xff] %v377
                  %v379 = vld [vmem:[%s289 + $0x360] sm:$0xff]
                  %380 = vst [vmem:[%s290 + $0x160] sm:$0xff] %v379
                  %v381 = vld [vmem:[%s289 + $0x368] sm:$0xff]
                  %382 = vst [vmem:[%s290 + $0x168] sm:$0xff] %v381
                  %v383 = vld [vmem:[%s289 + $0x370] sm:$0xff]
                  %384 = vst [vmem:[%s290 + $0x170] sm:$0xff] %v383
                  %v385 = vld [vmem:[%s289 + $0x378] sm:$0xff]
                  %386 = vst [vmem:[%s290 + $0x178] sm:$0xff] %v385
                  %v387 = vld [vmem:[%s289 + $0x480] sm:$0xff]
                  %388 = vst [vmem:[%s290 + $0x180] sm:$0xff] %v387
                  %v389 = vld [vmem:[%s289 + $0x488] sm:$0xff]
                  %390 = vst [vmem:[%s290 + $0x188] sm:$0xff] %v389
                  %v391 = vld [vmem:[%s289 + $0x490] sm:$0xff]
                  %392 = vst [vmem:[%s290 + $0x190] sm:$0xff] %v391
                  %v393 = vld [vmem:[%s289 + $0x498] sm:$0xff]
                  %394 = vst [vmem:[%s290 + $0x198] sm:$0xff] %v393
                  %v395 = vld [vmem:[%s289 + $0x4a0] sm:$0xff]
                  %396 = vst [vmem:[%s290 + $0x1a0] sm:$0xff] %v395
                  %v397 = vld [vmem:[%s289 + $0x4a8] sm:$0xff]
                  %398 = vst [vmem:[%s290 + $0x1a8] sm:$0xff] %v397
                  %v399 = vld [vmem:[%s289 + $0x4b0] sm:$0xff]
                  %400 = vst [vmem:[%s290 + $0x1b0] sm:$0xff] %v399
                  %v401 = vld [vmem:[%s289 + $0x4b8] sm:$0xff]
                  %402 = vst [vmem:[%s290 + $0x1b8] sm:$0xff] %v401
                  %v403 = vld [vmem:[%s289 + $0x4c0] sm:$0xff]
                  %404 = vst [vmem:[%s290 + $0x1c0] sm:$0xff] %v403
                  %v405 = vld [vmem:[%s289 + $0x4c8] sm:$0xff]
                  %406 = vst [vmem:[%s290 + $0x1c8] sm:$0xff] %v405
                  %v407 = vld [vmem:[%s289 + $0x4d0] sm:$0xff]
                  %408 = vst [vmem:[%s290 + $0x1d0] sm:$0xff] %v407
                  %v409 = vld [vmem:[%s289 + $0x4d8] sm:$0xff]
                  %410 = vst [vmem:[%s290 + $0x1d8] sm:$0xff] %v409
                  %v411 = vld [vmem:[%s289 + $0x4e0] sm:$0xff]
                  %412 = vst [vmem:[%s290 + $0x1e0] sm:$0xff] %v411
                  %v413 = vld [vmem:[%s289 + $0x4e8] sm:$0xff]
                  %414 = vst [vmem:[%s290 + $0x1e8] sm:$0xff] %v413
                  %v415 = vld [vmem:[%s289 + $0x4f0] sm:$0xff]
                  %416 = vst [vmem:[%s290 + $0x1f0] sm:$0xff] %v415
                  %v417 = vld [vmem:[%s289 + $0x4f8] sm:$0xff]
                  %418 = vst [vmem:[%s290 + $0x1f8] sm:$0xff] %v417
                $region56: #{net_forward.3} parent=50 // loop_footer
                  %s288 = sadd.s32 1, %s284
                $region57: #{net_forward.3} parent=50 // loop_footer_branch
                  %283 = sbr.rel target = $region53
                $region58: #{net_forward.3} parent=50 // loop_exit
                  _
              $region51: #{net_forward.3} parent=35 // pred_fallthru
                _
              // Predicated region
              $region59: #{net_forward.3} parent=35 // pred_check
                _
              $region60: #{net_forward.3} parent=35 // pred_check_branch
                %420 = sbr.rel target = $region62
              $region61: #{net_forward.3} parent=35 // pred_region
                _
              $region62: #{net_forward.3} parent=35 // pred_fallthru
                _
            $region36: #{net_forward.3} parent=31 // pred_fallthru
              _
            // Predicated region
            $region37: #{net_forward.3} parent=31 // pred_check
              _
            $region38: #{net_forward.3} parent=31 // pred_check_branch
              %143 = sbr.rel target = $region40
            $region39: #{net_forward.3} parent=31 // pred_region
              loop: start=0, step=1, limit=1
              $region41: #{net_forward.3} parent=39 // loop_pre_header
                _
              $region42: #{net_forward.3} parent=39 // loop_header
                %s146 = sphi 0, %s150
                %p147 = scmp.ge.s32.totalorder %s146, 1
                %s151 = sphi %s137, %s137
                %s152 = sphi %s134, %s134
              $region43: #{net_forward.3} parent=39 // loop_header_branch
                %149 = sbr.rel (%p147) target = $region47
              $region44: #{net_forward.3} parent=39 // loop_body
                %v153 = vld [vmem:[%s151] sm:$0xff]
                %154 = vst [vmem:[%s152] sm:$0xff] %v153
                %v155 = vld [vmem:[%s151 + $0x8] sm:$0xff]
                %156 = vst [vmem:[%s152 + $0x8] sm:$0xff] %v155
                %v157 = vld [vmem:[%s151 + $0x10] sm:$0xff]
                %158 = vst [vmem:[%s152 + $0x10] sm:$0xff] %v157
                %v159 = vld [vmem:[%s151 + $0x18] sm:$0xff]
                %160 = vst [vmem:[%s152 + $0x18] sm:$0xff] %v159
                %v161 = vld [vmem:[%s151 + $0x20] sm:$0xff]
                %162 = vst [vmem:[%s152 + $0x20] sm:$0xff] %v161
                %v163 = vld [vmem:[%s151 + $0x28] sm:$0xff]
                %164 = vst [vmem:[%s152 + $0x28] sm:$0xff] %v163
                %v165 = vld [vmem:[%s151 + $0x30] sm:$0xff]
                %166 = vst [vmem:[%s152 + $0x30] sm:$0xff] %v165
                %v167 = vld [vmem:[%s151 + $0x38] sm:$0xff]
                %168 = vst [vmem:[%s152 + $0x38] sm:$0xff] %v167
                %v169 = vld [vmem:[%s151 + $0x40] sm:$0xff]
                %170 = vst [vmem:[%s152 + $0x40] sm:$0xff] %v169
                %v171 = vld [vmem:[%s151 + $0x48] sm:$0xff]
                %172 = vst [vmem:[%s152 + $0x48] sm:$0xff] %v171
                %v173 = vld [vmem:[%s151 + $0x50] sm:$0xff]
                %174 = vst [vmem:[%s152 + $0x50] sm:$0xff] %v173
                %v175 = vld [vmem:[%s151 + $0x58] sm:$0xff]
                %176 = vst [vmem:[%s152 + $0x58] sm:$0xff] %v175
                %v177 = vld [vmem:[%s151 + $0x60] sm:$0xff]
                %178 = vst [vmem:[%s152 + $0x60] sm:$0xff] %v177
                %v179 = vld [vmem:[%s151 + $0x68] sm:$0xff]
                %180 = vst [vmem:[%s152 + $0x68] sm:$0xff] %v179
                %v181 = vld [vmem:[%s151 + $0x70] sm:$0xff]
                %182 = vst [vmem:[%s152 + $0x70] sm:$0xff] %v181
                %v183 = vld [vmem:[%s151 + $0x78] sm:$0xff]
                %184 = vst [vmem:[%s152 + $0x78] sm:$0xff] %v183
                %v185 = vld [vmem:[%s151 + $0x180] sm:$0xff]
                %186 = vst [vmem:[%s152 + $0x80] sm:$0xff] %v185
                %v187 = vld [vmem:[%s151 + $0x188] sm:$0xff]
                %188 = vst [vmem:[%s152 + $0x88] sm:$0xff] %v187
                %v189 = vld [vmem:[%s151 + $0x190] sm:$0xff]
                %190 = vst [vmem:[%s152 + $0x90] sm:$0xff] %v189
                %v191 = vld [vmem:[%s151 + $0x198] sm:$0xff]
                %192 = vst [vmem:[%s152 + $0x98] sm:$0xff] %v191
                %v193 = vld [vmem:[%s151 + $0x1a0] sm:$0xff]
                %194 = vst [vmem:[%s152 + $0xa0] sm:$0xff] %v193
                %v195 = vld [vmem:[%s151 + $0x1a8] sm:$0xff]
                %196 = vst [vmem:[%s152 + $0xa8] sm:$0xff] %v195
                %v197 = vld [vmem:[%s151 + $0x1b0] sm:$0xff]
                %198 = vst [vmem:[%s152 + $0xb0] sm:$0xff] %v197
                %v199 = vld [vmem:[%s151 + $0x1b8] sm:$0xff]
                %200 = vst [vmem:[%s152 + $0xb8] sm:$0xff] %v199
                %v201 = vld [vmem:[%s151 + $0x1c0] sm:$0xff]
                %202 = vst [vmem:[%s152 + $0xc0] sm:$0xff] %v201
                %v203 = vld [vmem:[%s151 + $0x1c8] sm:$0xff]
                %204 = vst [vmem:[%s152 + $0xc8] sm:$0xff] %v203
                %v205 = vld [vmem:[%s151 + $0x1d0] sm:$0xff]
                %206 = vst [vmem:[%s152 + $0xd0] sm:$0xff] %v205
                %v207 = vld [vmem:[%s151 + $0x1d8] sm:$0xff]
                %208 = vst [vmem:[%s152 + $0xd8] sm:$0xff] %v207
                %v209 = vld [vmem:[%s151 + $0x1e0] sm:$0xff]
                %210 = vst [vmem:[%s152 + $0xe0] sm:$0xff] %v209
                %v211 = vld [vmem:[%s151 + $0x1e8] sm:$0xff]
                %212 = vst [vmem:[%s152 + $0xe8] sm:$0xff] %v211
                %v213 = vld [vmem:[%s151 + $0x1f0] sm:$0xff]
                %214 = vst [vmem:[%s152 + $0xf0] sm:$0xff] %v213
                %v215 = vld [vmem:[%s151 + $0x1f8] sm:$0xff]
                %216 = vst [vmem:[%s152 + $0xf8] sm:$0xff] %v215
                %v217 = vld [vmem:[%s151 + $0x300] sm:$0xff]
                %218 = vst [vmem:[%s152 + $0x100] sm:$0xff] %v217
                %v219 = vld [vmem:[%s151 + $0x308] sm:$0xff]
                %220 = vst [vmem:[%s152 + $0x108] sm:$0xff] %v219
                %v221 = vld [vmem:[%s151 + $0x310] sm:$0xff]
                %222 = vst [vmem:[%s152 + $0x110] sm:$0xff] %v221
                %v223 = vld [vmem:[%s151 + $0x318] sm:$0xff]
                %224 = vst [vmem:[%s152 + $0x118] sm:$0xff] %v223
                %v225 = vld [vmem:[%s151 + $0x320] sm:$0xff]
                %226 = vst [vmem:[%s152 + $0x120] sm:$0xff] %v225
                %v227 = vld [vmem:[%s151 + $0x328] sm:$0xff]
                %228 = vst [vmem:[%s152 + $0x128] sm:$0xff] %v227
                %v229 = vld [vmem:[%s151 + $0x330] sm:$0xff]
                %230 = vst [vmem:[%s152 + $0x130] sm:$0xff] %v229
                %v231 = vld [vmem:[%s151 + $0x338] sm:$0xff]
                %232 = vst [vmem:[%s152 + $0x138] sm:$0xff] %v231
                %v233 = vld [vmem:[%s151 + $0x340] sm:$0xff]
                %234 = vst [vmem:[%s152 + $0x140] sm:$0xff] %v233
                %v235 = vld [vmem:[%s151 + $0x348] sm:$0xff]
                %236 = vst [vmem:[%s152 + $0x148] sm:$0xff] %v235
                %v237 = vld [vmem:[%s151 + $0x350] sm:$0xff]
                %238 = vst [vmem:[%s152 + $0x150] sm:$0xff] %v237
                %v239 = vld [vmem:[%s151 + $0x358] sm:$0xff]
                %240 = vst [vmem:[%s152 + $0x158] sm:$0xff] %v239
                %v241 = vld [vmem:[%s151 + $0x360] sm:$0xff]
                %242 = vst [vmem:[%s152 + $0x160] sm:$0xff] %v241
                %v243 = vld [vmem:[%s151 + $0x368] sm:$0xff]
                %244 = vst [vmem:[%s152 + $0x168] sm:$0xff] %v243
                %v245 = vld [vmem:[%s151 + $0x370] sm:$0xff]
                %246 = vst [vmem:[%s152 + $0x170] sm:$0xff] %v245
                %v247 = vld [vmem:[%s151 + $0x378] sm:$0xff]
                %248 = vst [vmem:[%s152 + $0x178] sm:$0xff] %v247
                %v249 = vld [vmem:[%s151 + $0x480] sm:$0xff]
                %250 = vst [vmem:[%s152 + $0x180] sm:$0xff] %v249
                %v251 = vld [vmem:[%s151 + $0x488] sm:$0xff]
                %252 = vst [vmem:[%s152 + $0x188] sm:$0xff] %v251
                %v253 = vld [vmem:[%s151 + $0x490] sm:$0xff]
                %254 = vst [vmem:[%s152 + $0x190] sm:$0xff] %v253
                %v255 = vld [vmem:[%s151 + $0x498] sm:$0xff]
                %256 = vst [vmem:[%s152 + $0x198] sm:$0xff] %v255
                %v257 = vld [vmem:[%s151 + $0x4a0] sm:$0xff]
                %258 = vst [vmem:[%s152 + $0x1a0] sm:$0xff] %v257
                %v259 = vld [vmem:[%s151 + $0x4a8] sm:$0xff]
                %260 = vst [vmem:[%s152 + $0x1a8] sm:$0xff] %v259
                %v261 = vld [vmem:[%s151 + $0x4b0] sm:$0xff]
                %262 = vst [vmem:[%s152 + $0x1b0] sm:$0xff] %v261
                %v263 = vld [vmem:[%s151 + $0x4b8] sm:$0xff]
                %264 = vst [vmem:[%s152 + $0x1b8] sm:$0xff] %v263
                %v265 = vld [vmem:[%s151 + $0x4c0] sm:$0xff]
                %266 = vst [vmem:[%s152 + $0x1c0] sm:$0xff] %v265
                %v267 = vld [vmem:[%s151 + $0x4c8] sm:$0xff]
                %268 = vst [vmem:[%s152 + $0x1c8] sm:$0xff] %v267
                %v269 = vld [vmem:[%s151 + $0x4d0] sm:$0xff]
                %270 = vst [vmem:[%s152 + $0x1d0] sm:$0xff] %v269
                %v271 = vld [vmem:[%s151 + $0x4d8] sm:$0xff]
                %272 = vst [vmem:[%s152 + $0x1d8] sm:$0xff] %v271
                %v273 = vld [vmem:[%s151 + $0x4e0] sm:$0xff]
                %274 = vst [vmem:[%s152 + $0x1e0] sm:$0xff] %v273
                %v275 = vld [vmem:[%s151 + $0x4e8] sm:$0xff]
                %276 = vst [vmem:[%s152 + $0x1e8] sm:$0xff] %v275
                %v277 = vld [vmem:[%s151 + $0x4f0] sm:$0xff]
                %278 = vst [vmem:[%s152 + $0x1f0] sm:$0xff] %v277
                %v279 = vld [vmem:[%s151 + $0x4f8] sm:$0xff]
                %280 = vst [vmem:[%s152 + $0x1f8] sm:$0xff] %v279
              $region45: #{net_forward.3} parent=39 // loop_footer
                %s150 = sadd.s32 1, %s146
              $region46: #{net_forward.3} parent=39 // loop_footer_branch
                %145 = sbr.rel target = $region42
              $region47: #{net_forward.3} parent=39 // loop_exit
                _
            $region40: #{net_forward.3} parent=31 // pred_fallthru
              _
          $region32: #{net_forward.3} parent=27 // pred_fallthru
            _
          %421 = vnop
        $region28: #{net_forward.3} parent=23 // pred_fallthru
          _
      $region24: #{net_forward.3} parent=5 // pred_fallthru
        _
      %p422 = scmp.le.s32.totalorder 1, %s9
      %p423 = scmp.lt.s32.totalorder %s9, 4
      %p424 = pnand %p422, %p423
      %p425 = pneg %p424
      // Predicated region
      $region63: #{net_forward.3} parent=5 // pred_check
        _
      $region64: #{net_forward.3} parent=5 // pred_check_branch
        %427 = sbr.rel (%p424) target = $region66
      $region65: #{net_forward.3} parent=5 // pred_region
        %s428 = ssub.s32 %s9, 1
        %s429 = sand.u32 %s22, 1
        %s430 = sand.u32 %s22, 1
        %s431 = smul.addr %s430, 512
        %s432 = scalar_lea.vmem [#allocation2], %s431
        // Predicated region
        $region67: #{net_forward.3} parent=65 // pred_check
          %p433 = pneg %p35
        $region68: #{net_forward.3} parent=65 // pred_check_branch
          %435 = sbr.rel (%p433) target = $region70
        $region69: #{net_forward.3} parent=65 // pred_region
          _
        $region70: #{net_forward.3} parent=65 // pred_fallthru
          _
        %s436 = sand.u32 %s22, 1
        %s437 = sand.u32 %s22, 1
        %s438 = smul.addr %s437, 512
        %s439 = scalar_lea.vmem [#allocation2], %s438
        %p440 = pneg %p35
        %p441 = pneg %p32
        %p442 = pneg %p56
        %p443 = pneg %p53
        %p444 = pneg %p77
        %p445 = pneg %p74
        %p446 = pneg %p103
        %p447 = pneg %p100
        %s448 = smul.u32 16, %s14
        %p449 = scmp.lt.s32.totalorder %s448, 47
        %s450 = scalar_select %p449, %s448, 47
        %s451 = smul.addr %s450, 8
        %s452 = scalar_lea.vmem %s3, %s451
        %s453 = smul.u32 16, %s14
        %s454 = smul.u32 16, %s14
        %p455 = scmp.lt.s32.totalorder %s454, 47
        %s456 = scalar_select %p455, %s454, 47
        %s457 = smul.addr %s456, 8
        %s458 = scalar_lea.vmem %s3, %s457
        %s459 = smul.u32 16, %s14
        %v460 = vld [vmem:[%s1] sm:$0xff]
        %v461 = vld [vmem:[%s1 + $0x8] sm:$0xff]
        %v462 = vld [vmem:[%s1 + $0x10] sm:$0xff]
        %v463 = vld [vmem:[%s1 + $0x18] sm:$0xff]
        %v464 = vld [vmem:[%s1 + $0x20] sm:$0xff]
        %v465 = vld [vmem:[%s1 + $0x28] sm:$0xff]
        %v466 = vld [vmem:[%s1 + $0x30] sm:$0xff]
        %v467 = vld [vmem:[%s1 + $0x38] sm:$0xff]
        %v468 = vld [vmem:[%s1 + $0x40] sm:$0xff]
        %v469 = vld [vmem:[%s1 + $0x48] sm:$0xff]
        %v470 = vld [vmem:[%s1 + $0x50] sm:$0xff]
        %v471 = vld [vmem:[%s1 + $0x58] sm:$0xff]
        %v472 = vld [vmem:[%s1 + $0x60] sm:$0xff]
        %v473 = vld [vmem:[%s1 + $0x68] sm:$0xff]
        %v474 = vld [vmem:[%s1 + $0x70] sm:$0xff]
        %v475 = vld [vmem:[%s1 + $0x78] sm:$0xff]
        %v476 = vld [vmem:[%s432] sm:$0xff]
        %v477 = vld [vmem:[%s432 + $0x8] sm:$0xff]
        %v478 = vld [vmem:[%s432 + $0x10] sm:$0xff]
        %v479 = vld [vmem:[%s432 + $0x18] sm:$0xff]
        %v480 = vld [vmem:[%s432 + $0x20] sm:$0xff]
        %v481 = vld [vmem:[%s432 + $0x28] sm:$0xff]
        %v482 = vld [vmem:[%s432 + $0x30] sm:$0xff]
        %v483 = vld [vmem:[%s432 + $0x38] sm:$0xff]
        %v484 = vld [vmem:[%s432 + $0x40] sm:$0xff]
        %v485 = vld [vmem:[%s432 + $0x48] sm:$0xff]
        %v486 = vld [vmem:[%s432 + $0x50] sm:$0xff]
        %v487 = vld [vmem:[%s432 + $0x58] sm:$0xff]
        %v488 = vld [vmem:[%s432 + $0x60] sm:$0xff]
        %v489 = vld [vmem:[%s432 + $0x68] sm:$0xff]
        %v490 = vld [vmem:[%s432 + $0x70] sm:$0xff]
        %v491 = vld [vmem:[%s432 + $0x78] sm:$0xff]
        %492 = vmatprep.subr.mxu0 0.0
        %493 = vmatpush1.msra.mxu0 %v460
        %494 = vmatprep.subr.mxu0 0.0
        %495 = vmatpush1.msra.mxu0 %v461
        %496 = vmatprep.subr.mxu0 0.0
        %497 = vmatpush1.msra.mxu0 %v462
        %498 = vmatprep.subr.mxu0 0.0
        %499 = vmatpush1.msra.mxu0 %v463
        %500 = vmatprep.subr.mxu0 0.0
        %501 = vmatpush1.msra.mxu0 %v464
        %502 = vmatprep.subr.mxu0 0.0
        %503 = vmatpush1.msra.mxu0 %v465
        %504 = vmatprep.subr.mxu0 0.0
        %505 = vmatpush1.msra.mxu0 %v466
        %506 = vmatprep.subr.mxu0 0.0
        %507 = vmatpush1.msra.mxu0 %v467
        %508 = vmatprep.subr.mxu0 0.0
        %509 = vmatpush1.msra.mxu0 %v468
        %510 = vmatprep.subr.mxu0 0.0
        %511 = vmatpush1.msra.mxu0 %v469
        %512 = vmatprep.subr.mxu0 0.0
        %513 = vmatpush1.msra.mxu0 %v470
        %514 = vmatprep.subr.mxu0 0.0
        %515 = vmatpush1.msra.mxu0 %v471
        %516 = vmatprep.subr.mxu0 0.0
        %517 = vmatpush1.msra.mxu0 %v472
        %518 = vmatprep.subr.mxu0 0.0
        %519 = vmatpush1.msra.mxu0 %v473
        %520 = vmatprep.subr.mxu0 0.0
        %521 = vmatpush1.msra.mxu0 %v474
        %522 = vmatprep.subr.mxu0 0.0
        %523 = vmatpush1.msra.mxu0 %v475
        %524 = vmatprep.subr.mxu0 0.0
        %525 = vmatpush1.msra.mxu0 0.0
        %526 = vmatprep.subr.mxu0 0.0
        %527 = vmatpush1.msra.mxu0 0.0
        %528 = vmatprep.subr.mxu0 0.0
        %529 = vmatpush1.msra.mxu0 0.0
        %530 = vmatprep.subr.mxu0 0.0
        %531 = vmatpush1.msra.mxu0 0.0
        %532 = vmatprep.subr.mxu0 0.0
        %533 = vmatpush1.msra.mxu0 0.0
        %534 = vmatprep.subr.mxu0 0.0
        %535 = vmatpush1.msra.mxu0 0.0
        %536 = vmatprep.subr.mxu0 0.0
        %537 = vmatpush1.msra.mxu0 0.0
        %538 = vmatprep.subr.mxu0 0.0
        %539 = vmatpush1.msra.mxu0 0.0
        %540 = vmatprep.subr.mxu0 0.0
        %541 = vmatpush1.msra.mxu0 0.0
        %542 = vmatprep.subr.mxu0 0.0
        %543 = vmatpush1.msra.mxu0 0.0
        %544 = vmatprep.subr.mxu0 0.0
        %545 = vmatpush1.msra.mxu0 0.0
        %546 = vmatprep.subr.mxu0 0.0
        %547 = vmatpush1.msra.mxu0 0.0
        %548 = vmatprep.subr.mxu0 0.0
        %549 = vmatpush1.msra.mxu0 0.0
        %550 = vmatprep.subr.mxu0 0.0
        %551 = vmatpush1.msra.mxu0 0.0
        %552 = vmatprep.subr.mxu0 0.0
        %553 = vmatpush1.msra.mxu0 0.0
        %554 = vmatprep.subr.mxu0 0.0
        %555 = vmatpush1.msra.mxu0 0.0
        %556 = vmatprep.mubr.f32.mxu0 0.0
        %557 = vmatmul.mubr.f32.gmra.mrb[0].mxu0 %v476
        %v558 = vpop.f32.mrb[0].mxu0
        %v559 = vadd.f32 0.0, %v558
        %v560 = vpop.f32.mrb[0].mxu0
        %561 = vmatprep.mubr.f32.mxu0 0.0
        %562 = vmatmul.mubr.f32.gmra.mrb[0].mxu0 %v477
        %v563 = vpop.f32.mrb[0].mxu0
        %v564 = vadd.f32 0.0, %v563
        %v565 = vpop.f32.mrb[0].mxu0
        %566 = vmatprep.mubr.f32.mxu0 0.0
        %567 = vmatmul.mubr.f32.gmra.mrb[0].mxu0 %v478
        %v568 = vpop.f32.mrb[0].mxu0
        %v569 = vadd.f32 0.0, %v568
        %v570 = vpop.f32.mrb[0].mxu0
        %571 = vmatprep.mubr.f32.mxu0 0.0
        %572 = vmatmul.mubr.f32.gmra.mrb[0].mxu0 %v479
        %v573 = vpop.f32.mrb[0].mxu0
        %v574 = vadd.f32 0.0, %v573
        %v575 = vpop.f32.mrb[0].mxu0
        %576 = vmatprep.mubr.f32.mxu0 0.0
        %577 = vmatmul.mubr.f32.gmra.mrb[0].mxu0 %v480
        %v578 = vpop.f32.mrb[0].mxu0
        %v579 = vadd.f32 0.0, %v578
        %v580 = vpop.f32.mrb[0].mxu0
        %581 = vmatprep.mubr.f32.mxu0 0.0
        %582 = vmatmul.mubr.f32.gmra.mrb[0].mxu0 %v481
        %v583 = vpop.f32.mrb[0].mxu0
        %v584 = vadd.f32 0.0, %v583
        %v585 = vpop.f32.mrb[0].mxu0
        %586 = vmatprep.mubr.f32.mxu0 0.0
        %587 = vmatmul.mubr.f32.gmra.mrb[0].mxu0 %v482
        %v588 = vpop.f32.mrb[0].mxu0
        %v589 = vadd.f32 0.0, %v588
        %v590 = vpop.f32.mrb[0].mxu0
        %591 = vmatprep.mubr.f32.mxu0 0.0
        %592 = vmatmul.mubr.f32.gmra.mrb[0].mxu0 %v483
        %v593 = vpop.f32.mrb[0].mxu0
        %v594 = vadd.f32 0.0, %v593
        %v595 = vpop.f32.mrb[0].mxu0
        %596 = vmatprep.mubr.f32.mxu0 0.0
        %597 = vmatmul.mubr.f32.gmra.mrb[0].mxu0 %v484
        %v598 = vpop.f32.mrb[0].mxu0
        %v599 = vadd.f32 0.0, %v598
        %v600 = vpop.f32.mrb[0].mxu0
        %601 = vmatprep.mubr.f32.mxu0 0.0
        %602 = vmatmul.mubr.f32.gmra.mrb[0].mxu0 %v485
        %v603 = vpop.f32.mrb[0].mxu0
        %v604 = vadd.f32 0.0, %v603
        %v605 = vpop.f32.mrb[0].mxu0
        %606 = vmatprep.mubr.f32.mxu0 0.0
        %607 = vmatmul.mubr.f32.gmra.mrb[0].mxu0 %v486
        %v608 = vpop.f32.mrb[0].mxu0
        %v609 = vadd.f32 0.0, %v608
        %v610 = vpop.f32.mrb[0].mxu0
        %611 = vmatprep.mubr.f32.mxu0 0.0
        %612 = vmatmul.mubr.f32.gmra.mrb[0].mxu0 %v487
        %v613 = vpop.f32.mrb[0].mxu0
        %v614 = vadd.f32 0.0, %v613
        %v615 = vpop.f32.mrb[0].mxu0
        %616 = vmatprep.mubr.f32.mxu0 0.0
        %617 = vmatmul.mubr.f32.gmra.mrb[0].mxu0 %v488
        %v618 = vpop.f32.mrb[0].mxu0
        %v619 = vadd.f32 0.0, %v618
        %v620 = vpop.f32.mrb[0].mxu0
        %621 = vmatprep.mubr.f32.mxu0 0.0
        %622 = vmatmul.mubr.f32.gmra.mrb[0].mxu0 %v489
        %v623 = vpop.f32.mrb[0].mxu0
        %v624 = vadd.f32 0.0, %v623
        %v625 = vpop.f32.mrb[0].mxu0
        %626 = vmatprep.mubr.f32.mxu0 0.0
        %627 = vmatmul.mubr.f32.gmra.mrb[0].mxu0 %v490
        %v628 = vpop.f32.mrb[0].mxu0
        %v629 = vadd.f32 0.0, %v628
        %v630 = vpop.f32.mrb[0].mxu0
        %631 = vmatprep.mubr.f32.mxu0 0.0
        %632 = vmatmul.mubr.f32.gmra.mrb[0].mxu0 %v491
        %v633 = vpop.f32.mrb[0].mxu0
        %v634 = vadd.f32 0.0, %v633
        %v635 = vpop.f32.mrb[0].mxu0
        %636 = vdwg.mxu0
        %s637 = scalar_lea.vmem %s432, 128 [#allocation2]
        %v638 = vld [vmem:[%s637] sm:$0xff]
        %v639 = vld [vmem:[%s637 + $0x8] sm:$0xff]
        %v640 = vld [vmem:[%s637 + $0x10] sm:$0xff]
        %v641 = vld [vmem:[%s637 + $0x18] sm:$0xff]
        %v642 = vld [vmem:[%s637 + $0x20] sm:$0xff]
        %v643 = vld [vmem:[%s637 + $0x28] sm:$0xff]
        %v644 = vld [vmem:[%s637 + $0x30] sm:$0xff]
        %v645 = vld [vmem:[%s637 + $0x38] sm:$0xff]
        %v646 = vld [vmem:[%s637 + $0x40] sm:$0xff]
        %v647 = vld [vmem:[%s637 + $0x48] sm:$0xff]
        %v648 = vld [vmem:[%s637 + $0x50] sm:$0xff]
        %v649 = vld [vmem:[%s637 + $0x58] sm:$0xff]
        %v650 = vld [vmem:[%s637 + $0x60] sm:$0xff]
        %v651 = vld [vmem:[%s637 + $0x68] sm:$0xff]
        %v652 = vld [vmem:[%s637 + $0x70] sm:$0xff]
        %v653 = vld [vmem:[%s637 + $0x78] sm:$0xff]
        %654 = vmatprep.subr.mxu0 0.0
        %655 = vmatpush1.msra.mxu0 %v460
        %656 = vmatprep.subr.mxu0 0.0
        %657 = vmatpush1.msra.mxu0 %v461
        %658 = vmatprep.subr.mxu0 0.0
        %659 = vmatpush1.msra.mxu0 %v462
        %660 = vmatprep.subr.mxu0 0.0
        %661 = vmatpush1.msra.mxu0 %v463
        %662 = vmatprep.subr.mxu0 0.0
        %663 = vmatpush1.msra.mxu0 %v464
        %664 = vmatprep.subr.mxu0 0.0
        %665 = vmatpush1.msra.mxu0 %v465
        %666 = vmatprep.subr.mxu0 0.0
        %667 = vmatpush1.msra.mxu0 %v466
        %668 = vmatprep.subr.mxu0 0.0
        %669 = vmatpush1.msra.mxu0 %v467
        %670 = vmatprep.subr.mxu0 0.0
        %671 = vmatpush1.msra.mxu0 %v468
        %672 = vmatprep.subr.mxu0 0.0
        %673 = vmatpush1.msra.mxu0 %v469
        %674 = vmatprep.subr.mxu0 0.0
        %675 = vmatpush1.msra.mxu0 %v470
        %676 = vmatprep.subr.mxu0 0.0
        %677 = vmatpush1.msra.mxu0 %v471
        %678 = vmatprep.subr.mxu0 0.0
        %679 = vmatpush1.msra.mxu0 %v472
        %680 = vmatprep.subr.mxu0 0.0
        %681 = vmatpush1.msra.mxu0 %v473
        %682 = vmatprep.subr.mxu0 0.0
        %683 = vmatpush1.msra.mxu0 %v474
        %684 = vmatprep.subr.mxu0 0.0
        %685 = vmatpush1.msra.mxu0 %v475
        %686 = vmatprep.subr.mxu0 0.0
        %687 = vmatpush1.msra.mxu0 0.0
        %688 = vmatprep.subr.mxu0 0.0
        %689 = vmatpush1.msra.mxu0 0.0
        %690 = vmatprep.subr.mxu0 0.0
        %691 = vmatpush1.msra.mxu0 0.0
        %692 = vmatprep.subr.mxu0 0.0
        %693 = vmatpush1.msra.mxu0 0.0
        %694 = vmatprep.subr.mxu0 0.0
        %695 = vmatpush1.msra.mxu0 0.0
        %696 = vmatprep.subr.mxu0 0.0
        %697 = vmatpush1.msra.mxu0 0.0
        %698 = vmatprep.subr.mxu0 0.0
        %699 = vmatpush1.msra.mxu0 0.0
        %700 = vmatprep.subr.mxu0 0.0
        %701 = vmatpush1.msra.mxu0 0.0
        %702 = vmatprep.subr.mxu0 0.0
        %703 = vmatpush1.msra.mxu0 0.0
        %704 = vmatprep.subr.mxu0 0.0
        %705 = vmatpush1.msra.mxu0 0.0
        %706 = vmatprep.subr.mxu0 0.0
        %707 = vmatpush1.msra.mxu0 0.0
        %708 = vmatprep.subr.mxu0 0.0
        %709 = vmatpush1.msra.mxu0 0.0
        %710 = vmatprep.subr.mxu0 0.0
        %711 = vmatpush1.msra.mxu0 0.0
        %712 = vmatprep.subr.mxu0 0.0
        %713 = vmatpush1.msra.mxu0 0.0
        %714 = vmatprep.subr.mxu0 0.0
        %715 = vmatpush1.msra.mxu0 0.0
        %716 = vmatprep.subr.mxu0 0.0
        %717 = vmatpush1.msra.mxu0 0.0
        %718 = vmatprep.mubr.f32.mxu0 0.0
        %719 = vmatmul.mubr.f32.gmra.mrb[0].mxu0 %v638
        %v720 = vpop.f32.mrb[0].mxu0
        %v721 = vadd.f32 0.0, %v720
        %v722 = vpop.f32.mrb[0].mxu0
        %723 = vmatprep.mubr.f32.mxu0 0.0
        %724 = vmatmul.mubr.f32.gmra.mrb[0].mxu0 %v639
        %v725 = vpop.f32.mrb[0].mxu0
        %v726 = vadd.f32 0.0, %v725
        %v727 = vpop.f32.mrb[0].mxu0
        %728 = vmatprep.mubr.f32.mxu0 0.0
        %729 = vmatmul.mubr.f32.gmra.mrb[0].mxu0 %v640
        %v730 = vpop.f32.mrb[0].mxu0
        %v731 = vadd.f32 0.0, %v730
        %v732 = vpop.f32.mrb[0].mxu0
        %733 = vmatprep.mubr.f32.mxu0 0.0
        %734 = vmatmul.mubr.f32.gmra.mrb[0].mxu0 %v641
        %v735 = vpop.f32.mrb[0].mxu0
        %v736 = vadd.f32 0.0, %v735
        %v737 = vpop.f32.mrb[0].mxu0
        %738 = vmatprep.mubr.f32.mxu0 0.0
        %739 = vmatmul.mubr.f32.gmra.mrb[0].mxu0 %v642
        %v740 = vpop.f32.mrb[0].mxu0
        %v741 = vadd.f32 0.0, %v740
        %v742 = vpop.f32.mrb[0].mxu0
        %743 = vmatprep.mubr.f32.mxu0 0.0
        %744 = vmatmul.mubr.f32.gmra.mrb[0].mxu0 %v643
        %v745 = vpop.f32.mrb[0].mxu0
        %v746 = vadd.f32 0.0, %v745
        %v747 = vpop.f32.mrb[0].mxu0
        %748 = vmatprep.mubr.f32.mxu0 0.0
        %749 = vmatmul.mubr.f32.gmra.mrb[0].mxu0 %v644
        %v750 = vpop.f32.mrb[0].mxu0
        %v751 = vadd.f32 0.0, %v750
        %v752 = vpop.f32.mrb[0].mxu0
        %753 = vmatprep.mubr.f32.mxu0 0.0
        %754 = vmatmul.mubr.f32.gmra.mrb[0].mxu0 %v645
        %v755 = vpop.f32.mrb[0].mxu0
        %v756 = vadd.f32 0.0, %v755
        %v757 = vpop.f32.mrb[0].mxu0
        %758 = vmatprep.mubr.f32.mxu0 0.0
        %759 = vmatmul.mubr.f32.gmra.mrb[0].mxu0 %v646
        %v760 = vpop.f32.mrb[0].mxu0
        %v761 = vadd.f32 0.0, %v760
        %v762 = vpop.f32.mrb[0].mxu0
        %763 = vmatprep.mubr.f32.mxu0 0.0
        %764 = vmatmul.mubr.f32.gmra.mrb[0].mxu0 %v647
        %v765 = vpop.f32.mrb[0].mxu0
        %v766 = vadd.f32 0.0, %v765
        %v767 = vpop.f32.mrb[0].mxu0
        %768 = vmatprep.mubr.f32.mxu0 0.0
        %769 = vmatmul.mubr.f32.gmra.mrb[0].mxu0 %v648
        %v770 = vpop.f32.mrb[0].mxu0
        %v771 = vadd.f32 0.0, %v770
        %v772 = vpop.f32.mrb[0].mxu0
        %773 = vmatprep.mubr.f32.mxu0 0.0
        %774 = vmatmul.mubr.f32.gmra.mrb[0].mxu0 %v649
        %v775 = vpop.f32.mrb[0].mxu0
        %v776 = vadd.f32 0.0, %v775
        %v777 = vpop.f32.mrb[0].mxu0
        %778 = vmatprep.mubr.f32.mxu0 0.0
        %779 = vmatmul.mubr.f32.gmra.mrb[0].mxu0 %v650
        %v780 = vpop.f32.mrb[0].mxu0
        %v781 = vadd.f32 0.0, %v780
        %v782 = vpop.f32.mrb[0].mxu0
        %783 = vmatprep.mubr.f32.mxu0 0.0
        %784 = vmatmul.mubr.f32.gmra.mrb[0].mxu0 %v651
        %v785 = vpop.f32.mrb[0].mxu0
        %v786 = vadd.f32 0.0, %v785
        %v787 = vpop.f32.mrb[0].mxu0
        %788 = vmatprep.mubr.f32.mxu0 0.0
        %789 = vmatmul.mubr.f32.gmra.mrb[0].mxu0 %v652
        %v790 = vpop.f32.mrb[0].mxu0
        %v791 = vadd.f32 0.0, %v790
        %v792 = vpop.f32.mrb[0].mxu0
        %793 = vmatprep.mubr.f32.mxu0 0.0
        %794 = vmatmul.mubr.f32.gmra.mrb[0].mxu0 %v653
        %v795 = vpop.f32.mrb[0].mxu0
        %v796 = vadd.f32 0.0, %v795
        %v797 = vpop.f32.mrb[0].mxu0
        %798 = vdwg.mxu0
        %v799 = vmax.f32 %v559, %v721
        %v800 = vmax.f32 %v564, %v726
        %v801 = vmax.f32 %v569, %v731
        %v802 = vmax.f32 %v574, %v736
        %v803 = vmax.f32 %v579, %v741
        %v804 = vmax.f32 %v584, %v746
        %v805 = vmax.f32 %v589, %v751
        %v806 = vmax.f32 %v594, %v756
        %v807 = vmax.f32 %v599, %v761
        %v808 = vmax.f32 %v604, %v766
        %v809 = vmax.f32 %v609, %v771
        %v810 = vmax.f32 %v614, %v776
        %v811 = vmax.f32 %v619, %v781
        %v812 = vmax.f32 %v624, %v786
        %v813 = vmax.f32 %v629, %v791
        %v814 = vmax.f32 %v634, %v796
        %s815 = scalar_lea.vmem %s432, 256 [#allocation2]
        %v816 = vld [vmem:[%s815] sm:$0xff]
        %v817 = vld [vmem:[%s815 + $0x8] sm:$0xff]
        %v818 = vld [vmem:[%s815 + $0x10] sm:$0xff]
        %v819 = vld [vmem:[%s815 + $0x18] sm:$0xff]
        %v820 = vld [vmem:[%s815 + $0x20] sm:$0xff]
        %v821 = vld [vmem:[%s815 + $0x28] sm:$0xff]
        %v822 = vld [vmem:[%s815 + $0x30] sm:$0xff]
        %v823 = vld [vmem:[%s815 + $0x38] sm:$0xff]
        %v824 = vld [vmem:[%s815 + $0x40] sm:$0xff]
        %v825 = vld [vmem:[%s815 + $0x48] sm:$0xff]
        %v826 = vld [vmem:[%s815 + $0x50] sm:$0xff]
        %v827 = vld [vmem:[%s815 + $0x58] sm:$0xff]
        %v828 = vld [vmem:[%s815 + $0x60] sm:$0xff]
        %v829 = vld [vmem:[%s815 + $0x68] sm:$0xff]
        %v830 = vld [vmem:[%s815 + $0x70] sm:$0xff]
        %v831 = vld [vmem:[%s815 + $0x78] sm:$0xff]
        %832 = vmatprep.subr.mxu0 0.0
        %833 = vmatpush1.msra.mxu0 %v460
        %834 = vmatprep.subr.mxu0 0.0
        %835 = vmatpush1.msra.mxu0 %v461
        %836 = vmatprep.subr.mxu0 0.0
        %837 = vmatpush1.msra.mxu0 %v462
        %838 = vmatprep.subr.mxu0 0.0
        %839 = vmatpush1.msra.mxu0 %v463
        %840 = vmatprep.subr.mxu0 0.0
        %841 = vmatpush1.msra.mxu0 %v464
        %842 = vmatprep.subr.mxu0 0.0
        %843 = vmatpush1.msra.mxu0 %v465
        %844 = vmatprep.subr.mxu0 0.0
        %845 = vmatpush1.msra.mxu0 %v466
        %846 = vmatprep.subr.mxu0 0.0
        %847 = vmatpush1.msra.mxu0 %v467
        %848 = vmatprep.subr.mxu0 0.0
        %849 = vmatpush1.msra.mxu0 %v468
        %850 = vmatprep.subr.mxu0 0.0
        %851 = vmatpush1.msra.mxu0 %v469
        %852 = vmatprep.subr.mxu0 0.0
        %853 = vmatpush1.msra.mxu0 %v470
        %854 = vmatprep.subr.mxu0 0.0
        %855 = vmatpush1.msra.mxu0 %v471
        %856 = vmatprep.subr.mxu0 0.0
        %857 = vmatpush1.msra.mxu0 %v472
        %858 = vmatprep.subr.mxu0 0.0
        %859 = vmatpush1.msra.mxu0 %v473
        %860 = vmatprep.subr.mxu0 0.0
        %861 = vmatpush1.msra.mxu0 %v474
        %862 = vmatprep.subr.mxu0 0.0
        %863 = vmatpush1.msra.mxu0 %v475
        %864 = vmatprep.subr.mxu0 0.0
        %865 = vmatpush1.msra.mxu0 0.0
        %866 = vmatprep.subr.mxu0 0.0
        %867 = vmatpush1.msra.mxu0 0.0
        %868 = vmatprep.subr.mxu0 0.0
        %869 = vmatpush1.msra.mxu0 0.0
        %870 = vmatprep.subr.mxu0 0.0
        %871 = vmatpush1.msra.mxu0 0.0
        %872 = vmatprep.subr.mxu0 0.0
        %873 = vmatpush1.msra.mxu0 0.0
        %874 = vmatprep.subr.mxu0 0.0
        %875 = vmatpush1.msra.mxu0 0.0
        %876 = vmatprep.subr.mxu0 0.0
        %877 = vmatpush1.msra.mxu0 0.0
        %878 = vmatprep.subr.mxu0 0.0
        %879 = vmatpush1.msra.mxu0 0.0
        %880 = vmatprep.subr.mxu0 0.0
        %881 = vmatpush1.msra.mxu0 0.0
        %882 = vmatprep.subr.mxu0 0.0
        %883 = vmatpush1.msra.mxu0 0.0
        %884 = vmatprep.subr.mxu0 0.0
        %885 = vmatpush1.msra.mxu0 0.0
        %886 = vmatprep.subr.mxu0 0.0
        %887 = vmatpush1.msra.mxu0 0.0
        %888 = vmatprep.subr.mxu0 0.0
        %889 = vmatpush1.msra.mxu0 0.0
        %890 = vmatprep.subr.mxu0 0.0
        %891 = vmatpush1.msra.mxu0 0.0
        %892 = vmatprep.subr.mxu0 0.0
        %893 = vmatpush1.msra.mxu0 0.0
        %894 = vmatprep.subr.mxu0 0.0
        %895 = vmatpush1.msra.mxu0 0.0
        %896 = vmatprep.mubr.f32.mxu0 0.0
        %897 = vmatmul.mubr.f32.gmra.mrb[0].mxu0 %v816
        %v898 = vpop.f32.mrb[0].mxu0
        %v899 = vadd.f32 0.0, %v898
        %v900 = vpop.f32.mrb[0].mxu0
        %901 = vmatprep.mubr.f32.mxu0 0.0
        %902 = vmatmul.mubr.f32.gmra.mrb[0].mxu0 %v817
        %v903 = vpop.f32.mrb[0].mxu0
        %v904 = vadd.f32 0.0, %v903
        %v905 = vpop.f32.mrb[0].mxu0
        %906 = vmatprep.mubr.f32.mxu0 0.0
        %907 = vmatmul.mubr.f32.gmra.mrb[0].mxu0 %v818
        %v908 = vpop.f32.mrb[0].mxu0
        %v909 = vadd.f32 0.0, %v908
        %v910 = vpop.f32.mrb[0].mxu0
        %911 = vmatprep.mubr.f32.mxu0 0.0
        %912 = vmatmul.mubr.f32.gmra.mrb[0].mxu0 %v819
        %v913 = vpop.f32.mrb[0].mxu0
        %v914 = vadd.f32 0.0, %v913
        %v915 = vpop.f32.mrb[0].mxu0
        %916 = vmatprep.mubr.f32.mxu0 0.0
        %917 = vmatmul.mubr.f32.gmra.mrb[0].mxu0 %v820
        %v918 = vpop.f32.mrb[0].mxu0
        %v919 = vadd.f32 0.0, %v918
        %v920 = vpop.f32.mrb[0].mxu0
        %921 = vmatprep.mubr.f32.mxu0 0.0
        %922 = vmatmul.mubr.f32.gmra.mrb[0].mxu0 %v821
        %v923 = vpop.f32.mrb[0].mxu0
        %v924 = vadd.f32 0.0, %v923
        %v925 = vpop.f32.mrb[0].mxu0
        %926 = vmatprep.mubr.f32.mxu0 0.0
        %927 = vmatmul.mubr.f32.gmra.mrb[0].mxu0 %v822
        %v928 = vpop.f32.mrb[0].mxu0
        %v929 = vadd.f32 0.0, %v928
        %v930 = vpop.f32.mrb[0].mxu0
        %931 = vmatprep.mubr.f32.mxu0 0.0
        %932 = vmatmul.mubr.f32.gmra.mrb[0].mxu0 %v823
        %v933 = vpop.f32.mrb[0].mxu0
        %v934 = vadd.f32 0.0, %v933
        %v935 = vpop.f32.mrb[0].mxu0
        %936 = vmatprep.mubr.f32.mxu0 0.0
        %937 = vmatmul.mubr.f32.gmra.mrb[0].mxu0 %v824
        %v938 = vpop.f32.mrb[0].mxu0
        %v939 = vadd.f32 0.0, %v938
        %v940 = vpop.f32.mrb[0].mxu0
        %941 = vmatprep.mubr.f32.mxu0 0.0
        %942 = vmatmul.mubr.f32.gmra.mrb[0].mxu0 %v825
        %v943 = vpop.f32.mrb[0].mxu0
        %v944 = vadd.f32 0.0, %v943
        %v945 = vpop.f32.mrb[0].mxu0
        %946 = vmatprep.mubr.f32.mxu0 0.0
        %947 = vmatmul.mubr.f32.gmra.mrb[0].mxu0 %v826
        %v948 = vpop.f32.mrb[0].mxu0
        %v949 = vadd.f32 0.0, %v948
        %v950 = vpop.f32.mrb[0].mxu0
        %951 = vmatprep.mubr.f32.mxu0 0.0
        %952 = vmatmul.mubr.f32.gmra.mrb[0].mxu0 %v827
        %v953 = vpop.f32.mrb[0].mxu0
        %v954 = vadd.f32 0.0, %v953
        %v955 = vpop.f32.mrb[0].mxu0
        %956 = vmatprep.mubr.f32.mxu0 0.0
        %957 = vmatmul.mubr.f32.gmra.mrb[0].mxu0 %v828
        %v958 = vpop.f32.mrb[0].mxu0
        %v959 = vadd.f32 0.0, %v958
        %v960 = vpop.f32.mrb[0].mxu0
        %961 = vmatprep.mubr.f32.mxu0 0.0
        %962 = vmatmul.mubr.f32.gmra.mrb[0].mxu0 %v829
        %v963 = vpop.f32.mrb[0].mxu0
        %v964 = vadd.f32 0.0, %v963
        %v965 = vpop.f32.mrb[0].mxu0
        %966 = vmatprep.mubr.f32.mxu0 0.0
        %967 = vmatmul.mubr.f32.gmra.mrb[0].mxu0 %v830
        %v968 = vpop.f32.mrb[0].mxu0
        %v969 = vadd.f32 0.0, %v968
        %v970 = vpop.f32.mrb[0].mxu0
        %971 = vmatprep.mubr.f32.mxu0 0.0
        %972 = vmatmul.mubr.f32.gmra.mrb[0].mxu0 %v831
        %v973 = vpop.f32.mrb[0].mxu0
        %v974 = vadd.f32 0.0, %v973
        %v975 = vpop.f32.mrb[0].mxu0
        %976 = vdwg.mxu0
        %v977 = vmax.f32 %v799, %v899
        %v978 = vmax.f32 %v800, %v904
        %v979 = vmax.f32 %v801, %v909
        %v980 = vmax.f32 %v802, %v914
        %v981 = vmax.f32 %v803, %v919
        %v982 = vmax.f32 %v804, %v924
        %v983 = vmax.f32 %v805, %v929
        %v984 = vmax.f32 %v806, %v934
        %v985 = vmax.f32 %v807, %v939
        %v986 = vmax.f32 %v808, %v944
        %v987 = vmax.f32 %v809, %v949
        %v988 = vmax.f32 %v810, %v954
        %v989 = vmax.f32 %v811, %v959
        %v990 = vmax.f32 %v812, %v964
        %v991 = vmax.f32 %v813, %v969
        %v992 = vmax.f32 %v814, %v974
        %s993 = scalar_lea.vmem %s432, 384 [#allocation2]
        %v994 = vld [vmem:[%s993] sm:$0xff]
        %v995 = vld [vmem:[%s993 + $0x8] sm:$0xff]
        %v996 = vld [vmem:[%s993 + $0x10] sm:$0xff]
        %v997 = vld [vmem:[%s993 + $0x18] sm:$0xff]
        %v998 = vld [vmem:[%s993 + $0x20] sm:$0xff]
        %v999 = vld [vmem:[%s993 + $0x28] sm:$0xff]
        %v1000 = vld [vmem:[%s993 + $0x30] sm:$0xff]
        %v1001 = vld [vmem:[%s993 + $0x38] sm:$0xff]
        %v1002 = vld [vmem:[%s993 + $0x40] sm:$0xff]
        %v1003 = vld [vmem:[%s993 + $0x48] sm:$0xff]
        %v1004 = vld [vmem:[%s993 + $0x50] sm:$0xff]
        %v1005 = vld [vmem:[%s993 + $0x58] sm:$0xff]
        %v1006 = vld [vmem:[%s993 + $0x60] sm:$0xff]
        %v1007 = vld [vmem:[%s993 + $0x68] sm:$0xff]
        %v1008 = vld [vmem:[%s993 + $0x70] sm:$0xff]
        %v1009 = vld [vmem:[%s993 + $0x78] sm:$0xff]
        %1010 = vmatprep.subr.mxu0 0.0
        %1011 = vmatpush1.msra.mxu0 %v460
        %1012 = vmatprep.subr.mxu0 0.0
        %1013 = vmatpush1.msra.mxu0 %v461
        %1014 = vmatprep.subr.mxu0 0.0
        %1015 = vmatpush1.msra.mxu0 %v462
        %1016 = vmatprep.subr.mxu0 0.0
        %1017 = vmatpush1.msra.mxu0 %v463
        %1018 = vmatprep.subr.mxu0 0.0
        %1019 = vmatpush1.msra.mxu0 %v464
        %1020 = vmatprep.subr.mxu0 0.0
        %1021 = vmatpush1.msra.mxu0 %v465
        %1022 = vmatprep.subr.mxu0 0.0
        %1023 = vmatpush1.msra.mxu0 %v466
        %1024 = vmatprep.subr.mxu0 0.0
        %1025 = vmatpush1.msra.mxu0 %v467
        %1026 = vmatprep.subr.mxu0 0.0
        %1027 = vmatpush1.msra.mxu0 %v468
        %1028 = vmatprep.subr.mxu0 0.0
        %1029 = vmatpush1.msra.mxu0 %v469
        %1030 = vmatprep.subr.mxu0 0.0
        %1031 = vmatpush1.msra.mxu0 %v470
        %1032 = vmatprep.subr.mxu0 0.0
        %1033 = vmatpush1.msra.mxu0 %v471
        %1034 = vmatprep.subr.mxu0 0.0
        %1035 = vmatpush1.msra.mxu0 %v472
        %1036 = vmatprep.subr.mxu0 0.0
        %1037 = vmatpush1.msra.mxu0 %v473
        %1038 = vmatprep.subr.mxu0 0.0
        %1039 = vmatpush1.msra.mxu0 %v474
        %1040 = vmatprep.subr.mxu0 0.0
        %1041 = vmatpush1.msra.mxu0 %v475
        %1042 = vmatprep.subr.mxu0 0.0
        %1043 = vmatpush1.msra.mxu0 0.0
        %1044 = vmatprep.subr.mxu0 0.0
        %1045 = vmatpush1.msra.mxu0 0.0
        %1046 = vmatprep.subr.mxu0 0.0
        %1047 = vmatpush1.msra.mxu0 0.0
        %1048 = vmatprep.subr.mxu0 0.0
        %1049 = vmatpush1.msra.mxu0 0.0
        %1050 = vmatprep.subr.mxu0 0.0
        %1051 = vmatpush1.msra.mxu0 0.0
        %1052 = vmatprep.subr.mxu0 0.0
        %1053 = vmatpush1.msra.mxu0 0.0
        %1054 = vmatprep.subr.mxu0 0.0
        %1055 = vmatpush1.msra.mxu0 0.0
        %1056 = vmatprep.subr.mxu0 0.0
        %1057 = vmatpush1.msra.mxu0 0.0
        %1058 = vmatprep.subr.mxu0 0.0
        %1059 = vmatpush1.msra.mxu0 0.0
        %1060 = vmatprep.subr.mxu0 0.0
        %1061 = vmatpush1.msra.mxu0 0.0
        %1062 = vmatprep.subr.mxu0 0.0
        %1063 = vmatpush1.msra.mxu0 0.0
        %1064 = vmatprep.subr.mxu0 0.0
        %1065 = vmatpush1.msra.mxu0 0.0
        %1066 = vmatprep.subr.mxu0 0.0
        %1067 = vmatpush1.msra.mxu0 0.0
        %1068 = vmatprep.subr.mxu0 0.0
        %1069 = vmatpush1.msra.mxu0 0.0
        %1070 = vmatprep.subr.mxu0 0.0
        %1071 = vmatpush1.msra.mxu0 0.0
        %1072 = vmatprep.subr.mxu0 0.0
        %1073 = vmatpush1.msra.mxu0 0.0
        %1074 = vmatprep.mubr.f32.mxu0 0.0
        %1075 = vmatmul.mubr.f32.gmra.mrb[0].mxu0 %v994
        %v1076 = vpop.f32.mrb[0].mxu0
        %v1077 = vadd.f32 0.0, %v1076
        %v1078 = vpop.f32.mrb[0].mxu0
        %1079 = vmatprep.mubr.f32.mxu0 0.0
        %1080 = vmatmul.mubr.f32.gmra.mrb[0].mxu0 %v995
        %v1081 = vpop.f32.mrb[0].mxu0
        %v1082 = vadd.f32 0.0, %v1081
        %v1083 = vpop.f32.mrb[0].mxu0
        %1084 = vmatprep.mubr.f32.mxu0 0.0
        %1085 = vmatmul.mubr.f32.gmra.mrb[0].mxu0 %v996
        %v1086 = vpop.f32.mrb[0].mxu0
        %v1087 = vadd.f32 0.0, %v1086
        %v1088 = vpop.f32.mrb[0].mxu0
        %1089 = vmatprep.mubr.f32.mxu0 0.0
        %1090 = vmatmul.mubr.f32.gmra.mrb[0].mxu0 %v997
        %v1091 = vpop.f32.mrb[0].mxu0
        %v1092 = vadd.f32 0.0, %v1091
        %v1093 = vpop.f32.mrb[0].mxu0
        %1094 = vmatprep.mubr.f32.mxu0 0.0
        %1095 = vmatmul.mubr.f32.gmra.mrb[0].mxu0 %v998
        %v1096 = vpop.f32.mrb[0].mxu0
        %v1097 = vadd.f32 0.0, %v1096
        %v1098 = vpop.f32.mrb[0].mxu0
        %1099 = vmatprep.mubr.f32.mxu0 0.0
        %1100 = vmatmul.mubr.f32.gmra.mrb[0].mxu0 %v999
        %v1101 = vpop.f32.mrb[0].mxu0
        %v1102 = vadd.f32 0.0, %v1101
        %v1103 = vpop.f32.mrb[0].mxu0
        %1104 = vmatprep.mubr.f32.mxu0 0.0
        %1105 = vmatmul.mubr.f32.gmra.mrb[0].mxu0 %v1000
        %v1106 = vpop.f32.mrb[0].mxu0
        %v1107 = vadd.f32 0.0, %v1106
        %v1108 = vpop.f32.mrb[0].mxu0
        %1109 = vmatprep.mubr.f32.mxu0 0.0
        %1110 = vmatmul.mubr.f32.gmra.mrb[0].mxu0 %v1001
        %v1111 = vpop.f32.mrb[0].mxu0
        %v1112 = vadd.f32 0.0, %v1111
        %v1113 = vpop.f32.mrb[0].mxu0
        %1114 = vmatprep.mubr.f32.mxu0 0.0
        %1115 = vmatmul.mubr.f32.gmra.mrb[0].mxu0 %v1002
        %v1116 = vpop.f32.mrb[0].mxu0
        %v1117 = vadd.f32 0.0, %v1116
        %v1118 = vpop.f32.mrb[0].mxu0
        %1119 = vmatprep.mubr.f32.mxu0 0.0
        %1120 = vmatmul.mubr.f32.gmra.mrb[0].mxu0 %v1003
        %v1121 = vpop.f32.mrb[0].mxu0
        %v1122 = vadd.f32 0.0, %v1121
        %v1123 = vpop.f32.mrb[0].mxu0
        %1124 = vmatprep.mubr.f32.mxu0 0.0
        %1125 = vmatmul.mubr.f32.gmra.mrb[0].mxu0 %v1004
        %v1126 = vpop.f32.mrb[0].mxu0
        %v1127 = vadd.f32 0.0, %v1126
        %v1128 = vpop.f32.mrb[0].mxu0
        %1129 = vmatprep.mubr.f32.mxu0 0.0
        %1130 = vmatmul.mubr.f32.gmra.mrb[0].mxu0 %v1005
        %v1131 = vpop.f32.mrb[0].mxu0
        %v1132 = vadd.f32 0.0, %v1131
        %v1133 = vpop.f32.mrb[0].mxu0
        %1134 = vmatprep.mubr.f32.mxu0 0.0
        %1135 = vmatmul.mubr.f32.gmra.mrb[0].mxu0 %v1006
        %v1136 = vpop.f32.mrb[0].mxu0
        %v1137 = vadd.f32 0.0, %v1136
        %v1138 = vpop.f32.mrb[0].mxu0
        %1139 = vmatprep.mubr.f32.mxu0 0.0
        %1140 = vmatmul.mubr.f32.gmra.mrb[0].mxu0 %v1007
        %v1141 = vpop.f32.mrb[0].mxu0
        %v1142 = vadd.f32 0.0, %v1141
        %v1143 = vpop.f32.mrb[0].mxu0
        %1144 = vmatprep.mubr.f32.mxu0 0.0
        %1145 = vmatmul.mubr.f32.gmra.mrb[0].mxu0 %v1008
        %v1146 = vpop.f32.mrb[0].mxu0
        %v1147 = vadd.f32 0.0, %v1146
        %v1148 = vpop.f32.mrb[0].mxu0
        %1149 = vmatprep.mubr.f32.mxu0 0.0
        %1150 = vmatmul.mubr.f32.gmra.mrb[0].mxu0 %v1009
        %v1151 = vpop.f32.mrb[0].mxu0
        %v1152 = vadd.f32 0.0, %v1151
        %v1153 = vpop.f32.mrb[0].mxu0
        %1154 = vdwg.mxu0
        %v1155 = vmax.f32 %v977, %v1077
        %v1156 = vmax.f32 %v978, %v1082
        %v1157 = vmax.f32 %v979, %v1087
        %v1158 = vmax.f32 %v980, %v1092
        %v1159 = vmax.f32 %v981, %v1097
        %v1160 = vmax.f32 %v982, %v1102
        %v1161 = vmax.f32 %v983, %v1107
        %v1162 = vmax.f32 %v984, %v1112
        %v1163 = vmax.f32 %v985, %v1117
        %v1164 = vmax.f32 %v986, %v1122
        %v1165 = vmax.f32 %v987, %v1127
        %v1166 = vmax.f32 %v988, %v1132
        %v1167 = vmax.f32 %v989, %v1137
        %v1168 = vmax.f32 %v990, %v1142
        %v1169 = vmax.f32 %v991, %v1147
        %v1170 = vmax.f32 %v992, %v1152
        %v1171 = vld [vmem:[%s2] sm:$0x1]
        %v1173 = vlaneseq
        %v1174 = vshrl.u32 %v1173, 7
        %v1175 = vsub.s32 0, %v1174
        %v1176 = vrot.slane %v1171, %v1175
        %v1178 = vadd.f32 %v1155, %v1176
        %v1179 = vadd.f32 %v1156, %v1176
        %v1180 = vadd.f32 %v1157, %v1176
        %v1181 = vadd.f32 %v1158, %v1176
        %v1182 = vadd.f32 %v1159, %v1176
        %v1183 = vadd.f32 %v1160, %v1176
        %v1184 = vadd.f32 %v1161, %v1176
        %v1185 = vadd.f32 %v1162, %v1176
        %v1186 = vadd.f32 %v1163, %v1176
        %v1187 = vadd.f32 %v1164, %v1176
        %v1188 = vadd.f32 %v1165, %v1176
        %v1189 = vadd.f32 %v1166, %v1176
        %v1190 = vadd.f32 %v1167, %v1176
        %v1191 = vadd.f32 %v1168, %v1176
        %v1192 = vadd.f32 %v1169, %v1176
        %v1193 = vadd.f32 %v1170, %v1176
        %v1194 = vmax.f32 %v1178, 0.0
        %v1195 = vmax.f32 %v1179, 0.0
        %v1196 = vmax.f32 %v1180, 0.0
        %v1197 = vmax.f32 %v1181, 0.0
        %v1198 = vmax.f32 %v1182, 0.0
        %v1199 = vmax.f32 %v1183, 0.0
        %v1200 = vmax.f32 %v1184, 0.0
        %v1201 = vmax.f32 %v1185, 0.0
        %v1202 = vmax.f32 %v1186, 0.0
        %v1203 = vmax.f32 %v1187, 0.0
        %v1204 = vmax.f32 %v1188, 0.0
        %v1205 = vmax.f32 %v1189, 0.0
        %v1206 = vmax.f32 %v1190, 0.0
        %v1207 = vmax.f32 %v1191, 0.0
        %v1208 = vmax.f32 %v1192, 0.0
        %v1209 = vmax.f32 %v1193, 0.0
        %1210 = vst [vmem:[%s458] sm:$0xff] %v1194
        %1211 = vst [vmem:[%s458 + $0x8] sm:$0xff] %v1195
        %1212 = vst [vmem:[%s458 + $0x10] sm:$0xff] %v1196
        %1213 = vst [vmem:[%s458 + $0x18] sm:$0xff] %v1197
        %1214 = vst [vmem:[%s458 + $0x20] sm:$0xff] %v1198
        %1215 = vst [vmem:[%s458 + $0x28] sm:$0xff] %v1199
        %1216 = vst [vmem:[%s458 + $0x30] sm:$0xff] %v1200
        %1217 = vst [vmem:[%s458 + $0x38] sm:$0xff] %v1201
        %1218 = vst [vmem:[%s458 + $0x40] sm:$0xff] %v1202
        %1219 = vst [vmem:[%s458 + $0x48] sm:$0xff] %v1203
        %1220 = vst [vmem:[%s458 + $0x50] sm:$0xff] %v1204
        %1221 = vst [vmem:[%s458 + $0x58] sm:$0xff] %v1205
        %1222 = vst [vmem:[%s458 + $0x60] sm:$0xff] %v1206
        %1223 = vst [vmem:[%s458 + $0x68] sm:$0xff] %v1207
        %1224 = vst [vmem:[%s458 + $0x70] sm:$0xff] %v1208
        %1225 = vst [vmem:[%s458 + $0x78] sm:$0xff] %v1209
        %s1226 = smul.u32 16, %s14
        %p1227 = scmp.lt.s32.totalorder %s1226, 47
        %s1228 = scalar_select %p1227, %s1226, 47
        %s1229 = smul.addr %s1228, 8
        %s1230 = scalar_lea.vmem %s3, %s1229
        // Predicated region
        $region71: #{net_forward.3} parent=65 // pred_check
          %p1231 = pneg %p100
        $region72: #{net_forward.3} parent=65 // pred_check_branch
          %1233 = sbr.rel (%p1231) target = $region74
        $region73: #{net_forward.3} parent=65 // pred_region
          %s1234 = smul.u32 16, %s14
        $region74: #{net_forward.3} parent=65 // pred_fallthru
          _
      $region66: #{net_forward.3} parent=5 // pred_fallthru
        _
      %p1235 = scmp.le.s32.totalorder 2, %s9
      // Predicated region
      $region75: #{net_forward.3} parent=5 // pred_check
        %p1236 = pneg %p1235
      $region76: #{net_forward.3} parent=5 // pred_check_branch
        %1238 = sbr.rel (%p1236) target = $region78
      $region77: #{net_forward.3} parent=5 // pred_region
        %s1239 = ssub.s32 %s9, 2
        // Predicated region
        $region79: #{net_forward.3} parent=77 // pred_check
          %p1240 = pneg %p106
        $region80: #{net_forward.3} parent=77 // pred_check_branch
          %1242 = sbr.rel (%p1240) target = $region82
        $region81: #{net_forward.3} parent=77 // pred_region
          %s1243 = smul.u32 16, %s15
          %p1244 = scmp.lt.s32.totalorder %s1243, 47
          %s1245 = scalar_select %p1244, %s1243, 47
          %s1246 = smul.addr %s1245, 8
          %s1247 = scalar_lea.vmem %s3, %s1246
        $region82: #{net_forward.3} parent=77 // pred_fallthru
          _
      $region78: #{net_forward.3} parent=5 // pred_fallthru
        _
    $region6: #{net_forward.3} parent=1 // loop_footer
      %s13 = sadd.s32 1, %s9
    $region7: #{net_forward.3} parent=1 // loop_footer_branch
      %8 = sbr.rel target = $region3
    $region8: #{net_forward.3} parent=1 // loop_exit
      _

// kernel: net_forward.4
$region0: #{net_forward.4}
  #allocation0 [shape = 'u32[]', space=smem, size = 0x4, offset = 0x4, fixed_abs, tag = 'smem constant byte address 0x4 - core index']
  #allocation1 [shape = 'u32[144,128]{1,0:T(1,128)}', space=vmem, size = 0x12000, scoped, tag = 'internal scratch']
  %s0 = inlined_call_operand.vmem [shape: f32[4,32,256], index: 0, kind: input, shape index: {}]
  %s1 = inlined_call_operand.vmem [shape: f32[256,128], index: 1, kind: input, shape index: {}]
  %s2 = inlined_call_operand.vmem [shape: f32[1,128], index: 2, kind: input, shape index: {}]
  %s3 = inlined_call_operand.vmem [shape: f32[32,128], index: 3, kind: output, shape index: {}]
  %s4 = sld [smem:[#allocation0]]
  $region22: #{net_forward.4} parent=0
    _
  %s6 = ssub.s32 1, %s4
  %s7 = scalar_select 0, %s6, %s4
  // Predicated region
  $region2: #{net_forward.4} parent=0 // pred_check
    _
  $region3: #{net_forward.4} parent=0 // pred_check_branch
    %9 = sbr.rel (0) target = $region5
  $region4: #{net_forward.4} parent=0 // pred_region
    _
  $region5: #{net_forward.4} parent=0 // pred_fallthru
    _
  // Predicated region
  $region6: #{net_forward.4} parent=0 // pred_check
    _
  $region7: #{net_forward.4} parent=0 // pred_check_branch
    %11 = sbr.rel (0) target = $region9
  $region8: #{net_forward.4} parent=0 // pred_region
    _
  $region9: #{net_forward.4} parent=0 // pred_fallthru
    _
  // Predicated region
  $region10: #{net_forward.4} parent=0 // pred_check
    _
  $region11: #{net_forward.4} parent=0 // pred_check_branch
    %13 = sbr.rel (0) target = $region13
  $region12: #{net_forward.4} parent=0 // pred_region
    _
  $region13: #{net_forward.4} parent=0 // pred_fallthru
    _
  %v14 = vld [vmem:[%s1] sm:$0xff]
  %v15 = vld [vmem:[%s1 + $0x8] sm:$0xff]
  %v16 = vld [vmem:[%s1 + $0x10] sm:$0xff]
  %v17 = vld [vmem:[%s1 + $0x18] sm:$0xff]
  %v18 = vld [vmem:[%s1 + $0x20] sm:$0xff]
  %v19 = vld [vmem:[%s1 + $0x28] sm:$0xff]
  %v20 = vld [vmem:[%s1 + $0x30] sm:$0xff]
  %v21 = vld [vmem:[%s1 + $0x38] sm:$0xff]
  %v22 = vld [vmem:[%s1 + $0x40] sm:$0xff]
  %v23 = vld [vmem:[%s1 + $0x48] sm:$0xff]
  %v24 = vld [vmem:[%s1 + $0x50] sm:$0xff]
  %v25 = vld [vmem:[%s1 + $0x58] sm:$0xff]
  %v26 = vld [vmem:[%s1 + $0x60] sm:$0xff]
  %v27 = vld [vmem:[%s1 + $0x68] sm:$0xff]
  %v28 = vld [vmem:[%s1 + $0x70] sm:$0xff]
  %v29 = vld [vmem:[%s1 + $0x78] sm:$0xff]
  %v30 = vld [vmem:[%s1 + $0x80] sm:$0xff]
  %v31 = vld [vmem:[%s1 + $0x88] sm:$0xff]
  %v32 = vld [vmem:[%s1 + $0x90] sm:$0xff]
  %v33 = vld [vmem:[%s1 + $0x98] sm:$0xff]
  %v34 = vld [vmem:[%s1 + $0xa0] sm:$0xff]
  %v35 = vld [vmem:[%s1 + $0xa8] sm:$0xff]
  %v36 = vld [vmem:[%s1 + $0xb0] sm:$0xff]
  %v37 = vld [vmem:[%s1 + $0xb8] sm:$0xff]
  %v38 = vld [vmem:[%s1 + $0xc0] sm:$0xff]
  %v39 = vld [vmem:[%s1 + $0xc8] sm:$0xff]
  %v40 = vld [vmem:[%s1 + $0xd0] sm:$0xff]
  %v41 = vld [vmem:[%s1 + $0xd8] sm:$0xff]
  %v42 = vld [vmem:[%s1 + $0xe0] sm:$0xff]
  %v43 = vld [vmem:[%s1 + $0xe8] sm:$0xff]
  %v44 = vld [vmem:[%s1 + $0xf0] sm:$0xff]
  %v45 = vld [vmem:[%s1 + $0xf8] sm:$0xff]
  %v46 = vld [vmem:[%s0] sm:$0xff]
  %v47 = vld [vmem:[%s0 + $0x8] sm:$0xff]
  %v48 = vld [vmem:[%s0 + $0x10] sm:$0xff]
  %v49 = vld [vmem:[%s0 + $0x18] sm:$0xff]
  %v50 = vld [vmem:[%s0 + $0x20] sm:$0xff]
  %v51 = vld [vmem:[%s0 + $0x28] sm:$0xff]
  %v52 = vld [vmem:[%s0 + $0x30] sm:$0xff]
  %v53 = vld [vmem:[%s0 + $0x38] sm:$0xff]
  %54 = vmatprep.subr.mxu0 0.0
  %55 = vmatpush1.msra.mxu0 %v14
  %56 = vmatprep.subr.mxu0 0.0
  %57 = vmatpush1.msra.mxu0 %v15
  %58 = vmatprep.subr.mxu0 0.0
  %59 = vmatpush1.msra.mxu0 %v16
  %60 = vmatprep.subr.mxu0 0.0
  %61 = vmatpush1.msra.mxu0 %v17
  %62 = vmatprep.subr.mxu0 0.0
  %63 = vmatpush1.msra.mxu0 %v18
  %64 = vmatprep.subr.mxu0 0.0
  %65 = vmatpush1.msra.mxu0 %v19
  %66 = vmatprep.subr.mxu0 0.0
  %67 = vmatpush1.msra.mxu0 %v20
  %68 = vmatprep.subr.mxu0 0.0
  %69 = vmatpush1.msra.mxu0 %v21
  %70 = vmatprep.subr.mxu0 0.0
  %71 = vmatpush1.msra.mxu0 %v22
  %72 = vmatprep.subr.mxu0 0.0
  %73 = vmatpush1.msra.mxu0 %v23
  %74 = vmatprep.subr.mxu0 0.0
  %75 = vmatpush1.msra.mxu0 %v24
  %76 = vmatprep.subr.mxu0 0.0
  %77 = vmatpush1.msra.mxu0 %v25
  %78 = vmatprep.subr.mxu0 0.0
  %79 = vmatpush1.msra.mxu0 %v26
  %80 = vmatprep.subr.mxu0 0.0
  %81 = vmatpush1.msra.mxu0 %v27
  %82 = vmatprep.subr.mxu0 0.0
  %83 = vmatpush1.msra.mxu0 %v28
  %84 = vmatprep.subr.mxu0 0.0
  %85 = vmatpush1.msra.mxu0 %v29
  %86 = vmatprep.subr.mxu0 0.0
  %87 = vmatpush1.msra.mxu0 %v30
  %88 = vmatprep.subr.mxu0 0.0
  %89 = vmatpush1.msra.mxu0 %v31
  %90 = vmatprep.subr.mxu0 0.0
  %91 = vmatpush1.msra.mxu0 %v32
  %92 = vmatprep.subr.mxu0 0.0
  %93 = vmatpush1.msra.mxu0 %v33
  %94 = vmatprep.subr.mxu0 0.0
  %95 = vmatpush1.msra.mxu0 %v34
  %96 = vmatprep.subr.mxu0 0.0
  %97 = vmatpush1.msra.mxu0 %v35
  %98 = vmatprep.subr.mxu0 0.0
  %99 = vmatpush1.msra.mxu0 %v36
  %100 = vmatprep.subr.mxu0 0.0
  %101 = vmatpush1.msra.mxu0 %v37
  %102 = vmatprep.subr.mxu0 0.0
  %103 = vmatpush1.msra.mxu0 %v38
  %104 = vmatprep.subr.mxu0 0.0
  %105 = vmatpush1.msra.mxu0 %v39
  %106 = vmatprep.subr.mxu0 0.0
  %107 = vmatpush1.msra.mxu0 %v40
  %108 = vmatprep.subr.mxu0 0.0
  %109 = vmatpush1.msra.mxu0 %v41
  %110 = vmatprep.subr.mxu0 0.0
  %111 = vmatpush1.msra.mxu0 %v42
  %112 = vmatprep.subr.mxu0 0.0
  %113 = vmatpush1.msra.mxu0 %v43
  %114 = vmatprep.subr.mxu0 0.0
  %115 = vmatpush1.msra.mxu0 %v44
  %116 = vmatprep.subr.mxu0 0.0
  %117 = vmatpush1.msra.mxu0 %v45
  %118 = vmatprep.mubr.f32.mxu0 %v47
  %119 = vmatmul.mubr.f32.gmra.mrb[0].mxu0 %v46
  %v120 = vpop.f32.mrb[0].mxu0
  %v121 = vadd.f32 0.0, %v120
  %v122 = vpop.f32.mrb[0].mxu0
  %123 = vmatprep.mubr.f32.mxu0 %v49
  %124 = vmatmul.mubr.f32.gmra.mrb[0].mxu0 %v48
  %v125 = vpop.f32.mrb[0].mxu0
  %v126 = vadd.f32 0.0, %v125
  %v127 = vpop.f32.mrb[0].mxu0
  %128 = vmatprep.mubr.f32.mxu0 %v51
  %129 = vmatmul.mubr.f32.gmra.mrb[0].mxu0 %v50
  %v130 = vpop.f32.mrb[0].mxu0
  %v131 = vadd.f32 0.0, %v130
  %v132 = vpop.f32.mrb[0].mxu0
  %133 = vmatprep.mubr.f32.mxu0 %v53
  %134 = vmatmul.mubr.f32.gmra.mrb[0].mxu0 %v52
  %v135 = vpop.f32.mrb[0].mxu0
  %v136 = vadd.f32 0.0, %v135
  %v137 = vpop.f32.mrb[0].mxu0
  %138 = vdwg.mxu0
  %s139 = scalar_lea.vmem %s0, 64
  %v140 = vld [vmem:[%s139] sm:$0xff]
  %v141 = vld [vmem:[%s139 + $0x8] sm:$0xff]
  %v142 = vld [vmem:[%s139 + $0x10] sm:$0xff]
  %v143 = vld [vmem:[%s139 + $0x18] sm:$0xff]
  %v144 = vld [vmem:[%s139 + $0x20] sm:$0xff]
  %v145 = vld [vmem:[%s139 + $0x28] sm:$0xff]
  %v146 = vld [vmem:[%s139 + $0x30] sm:$0xff]
  %v147 = vld [vmem:[%s139 + $0x38] sm:$0xff]
  %148 = vmatprep.subr.mxu0 0.0
  %149 = vmatpush1.msra.mxu0 %v14
  %150 = vmatprep.subr.mxu0 0.0
  %151 = vmatpush1.msra.mxu0 %v15
  %152 = vmatprep.subr.mxu0 0.0
  %153 = vmatpush1.msra.mxu0 %v16
  %154 = vmatprep.subr.mxu0 0.0
  %155 = vmatpush1.msra.mxu0 %v17
  %156 = vmatprep.subr.mxu0 0.0
  %157 = vmatpush1.msra.mxu0 %v18
  %158 = vmatprep.subr.mxu0 0.0
  %159 = vmatpush1.msra.mxu0 %v19
  %160 = vmatprep.subr.mxu0 0.0
  %161 = vmatpush1.msra.mxu0 %v20
  %162 = vmatprep.subr.mxu0 0.0
  %163 = vmatpush1.msra.mxu0 %v21
  %164 = vmatprep.subr.mxu0 0.0
  %165 = vmatpush1.msra.mxu0 %v22
  %166 = vmatprep.subr.mxu0 0.0
  %167 = vmatpush1.msra.mxu0 %v23
  %168 = vmatprep.subr.mxu0 0.0
  %169 = vmatpush1.msra.mxu0 %v24
  %170 = vmatprep.subr.mxu0 0.0
  %171 = vmatpush1.msra.mxu0 %v25
  %172 = vmatprep.subr.mxu0 0.0
  %173 = vmatpush1.msra.mxu0 %v26
  %174 = vmatprep.subr.mxu0 0.0
  %175 = vmatpush1.msra.mxu0 %v27
  %176 = vmatprep.subr.mxu0 0.0
  %177 = vmatpush1.msra.mxu0 %v28
  %178 = vmatprep.subr.mxu0 0.0
  %179 = vmatpush1.msra.mxu0 %v29
  %180 = vmatprep.subr.mxu0 0.0
  %181 = vmatpush1.msra.mxu0 %v30
  %182 = vmatprep.subr.mxu0 0.0
  %183 = vmatpush1.msra.mxu0 %v31
  %184 = vmatprep.subr.mxu0 0.0
  %185 = vmatpush1.msra.mxu0 %v32
  %186 = vmatprep.subr.mxu0 0.0
  %187 = vmatpush1.msra.mxu0 %v33
  %188 = vmatprep.subr.mxu0 0.0
  %189 = vmatpush1.msra.mxu0 %v34
  %190 = vmatprep.subr.mxu0 0.0
  %191 = vmatpush1.msra.mxu0 %v35
  %192 = vmatprep.subr.mxu0 0.0
  %193 = vmatpush1.msra.mxu0 %v36
  %194 = vmatprep.subr.mxu0 0.0
  %195 = vmatpush1.msra.mxu0 %v37
  %196 = vmatprep.subr.mxu0 0.0
  %197 = vmatpush1.msra.mxu0 %v38
  %198 = vmatprep.subr.mxu0 0.0
  %199 = vmatpush1.msra.mxu0 %v39
  %200 = vmatprep.subr.mxu0 0.0
  %201 = vmatpush1.msra.mxu0 %v40
  %202 = vmatprep.subr.mxu0 0.0
  %203 = vmatpush1.msra.mxu0 %v41
  %204 = vmatprep.subr.mxu0 0.0
  %205 = vmatpush1.msra.mxu0 %v42
  %206 = vmatprep.subr.mxu0 0.0
  %207 = vmatpush1.msra.mxu0 %v43
  %208 = vmatprep.subr.mxu0 0.0
  %209 = vmatpush1.msra.mxu0 %v44
  %210 = vmatprep.subr.mxu0 0.0
  %211 = vmatpush1.msra.mxu0 %v45
  %212 = vmatprep.mubr.f32.mxu0 %v141
  %213 = vmatmul.mubr.f32.gmra.mrb[0].mxu0 %v140
  %v214 = vpop.f32.mrb[0].mxu0
  %v215 = vadd.f32 0.0, %v214
  %v216 = vpop.f32.mrb[0].mxu0
  %217 = vmatprep.mubr.f32.mxu0 %v143
  %218 = vmatmul.mubr.f32.gmra.mrb[0].mxu0 %v142
  %v219 = vpop.f32.mrb[0].mxu0
  %v220 = vadd.f32 0.0, %v219
  %v221 = vpop.f32.mrb[0].mxu0
  %222 = vmatprep.mubr.f32.mxu0 %v145
  %223 = vmatmul.mubr.f32.gmra.mrb[0].mxu0 %v144
  %v224 = vpop.f32.mrb[0].mxu0
  %v225 = vadd.f32 0.0, %v224
  %v226 = vpop.f32.mrb[0].mxu0
  %227 = vmatprep.mubr.f32.mxu0 %v147
  %228 = vmatmul.mubr.f32.gmra.mrb[0].mxu0 %v146
  %v229 = vpop.f32.mrb[0].mxu0
  %v230 = vadd.f32 0.0, %v229
  %v231 = vpop.f32.mrb[0].mxu0
  %232 = vdwg.mxu0
  %v233 = vmax.f32 %v121, %v215
  %v234 = vmax.f32 %v126, %v220
  %v235 = vmax.f32 %v131, %v225
  %v236 = vmax.f32 %v136, %v230
  %s237 = scalar_lea.vmem %s0, 128
  %v238 = vld [vmem:[%s237] sm:$0xff]
  %v239 = vld [vmem:[%s237 + $0x8] sm:$0xff]
  %v240 = vld [vmem:[%s237 + $0x10] sm:$0xff]
  %v241 = vld [vmem:[%s237 + $0x18] sm:$0xff]
  %v242 = vld [vmem:[%s237 + $0x20] sm:$0xff]
  %v243 = vld [vmem:[%s237 + $0x28] sm:$0xff]
  %v244 = vld [vmem:[%s237 + $0x30] sm:$0xff]
  %v245 = vld [vmem:[%s237 + $0x38] sm:$0xff]
  %246 = vmatprep.subr.mxu0 0.0
  %247 = vmatpush1.msra.mxu0 %v14
  %248 = vmatprep.subr.mxu0 0.0
  %249 = vmatpush1.msra.mxu0 %v15
  %250 = vmatprep.subr.mxu0 0.0
  %251 = vmatpush1.msra.mxu0 %v16
  %252 = vmatprep.subr.mxu0 0.0
  %253 = vmatpush1.msra.mxu0 %v17
  %254 = vmatprep.subr.mxu0 0.0
  %255 = vmatpush1.msra.mxu0 %v18
  %256 = vmatprep.subr.mxu0 0.0
  %257 = vmatpush1.msra.mxu0 %v19
  %258 = vmatprep.subr.mxu0 0.0
  %259 = vmatpush1.msra.mxu0 %v20
  %260 = vmatprep.subr.mxu0 0.0
  %261 = vmatpush1.msra.mxu0 %v21
  %262 = vmatprep.subr.mxu0 0.0
  %263 = vmatpush1.msra.mxu0 %v22
  %264 = vmatprep.subr.mxu0 0.0
  %265 = vmatpush1.msra.mxu0 %v23
  %266 = vmatprep.subr.mxu0 0.0
  %267 = vmatpush1.msra.mxu0 %v24
  %268 = vmatprep.subr.mxu0 0.0
  %269 = vmatpush1.msra.mxu0 %v25
  %270 = vmatprep.subr.mxu0 0.0
  %271 = vmatpush1.msra.mxu0 %v26
  %272 = vmatprep.subr.mxu0 0.0
  %273 = vmatpush1.msra.mxu0 %v27
  %274 = vmatprep.subr.mxu0 0.0
  %275 = vmatpush1.msra.mxu0 %v28
  %276 = vmatprep.subr.mxu0 0.0
  %277 = vmatpush1.msra.mxu0 %v29
  %278 = vmatprep.subr.mxu0 0.0
  %279 = vmatpush1.msra.mxu0 %v30
  %280 = vmatprep.subr.mxu0 0.0
  %281 = vmatpush1.msra.mxu0 %v31
  %282 = vmatprep.subr.mxu0 0.0
  %283 = vmatpush1.msra.mxu0 %v32
  %284 = vmatprep.subr.mxu0 0.0
  %285 = vmatpush1.msra.mxu0 %v33
  %286 = vmatprep.subr.mxu0 0.0
  %287 = vmatpush1.msra.mxu0 %v34
  %288 = vmatprep.subr.mxu0 0.0
  %289 = vmatpush1.msra.mxu0 %v35
  %290 = vmatprep.subr.mxu0 0.0
  %291 = vmatpush1.msra.mxu0 %v36
  %292 = vmatprep.subr.mxu0 0.0
  %293 = vmatpush1.msra.mxu0 %v37
  %294 = vmatprep.subr.mxu0 0.0
  %295 = vmatpush1.msra.mxu0 %v38
  %296 = vmatprep.subr.mxu0 0.0
  %297 = vmatpush1.msra.mxu0 %v39
  %298 = vmatprep.subr.mxu0 0.0
  %299 = vmatpush1.msra.mxu0 %v40
  %300 = vmatprep.subr.mxu0 0.0
  %301 = vmatpush1.msra.mxu0 %v41
  %302 = vmatprep.subr.mxu0 0.0
  %303 = vmatpush1.msra.mxu0 %v42
  %304 = vmatprep.subr.mxu0 0.0
  %305 = vmatpush1.msra.mxu0 %v43
  %306 = vmatprep.subr.mxu0 0.0
  %307 = vmatpush1.msra.mxu0 %v44
  %308 = vmatprep.subr.mxu0 0.0
  %309 = vmatpush1.msra.mxu0 %v45
  %310 = vmatprep.mubr.f32.mxu0 %v239
  %311 = vmatmul.mubr.f32.gmra.mrb[0].mxu0 %v238
  %v312 = vpop.f32.mrb[0].mxu0
  %v313 = vadd.f32 0.0, %v312
  %v314 = vpop.f32.mrb[0].mxu0
  %315 = vmatprep.mubr.f32.mxu0 %v241
  %316 = vmatmul.mubr.f32.gmra.mrb[0].mxu0 %v240
  %v317 = vpop.f32.mrb[0].mxu0
  %v318 = vadd.f32 0.0, %v317
  %v319 = vpop.f32.mrb[0].mxu0
  %320 = vmatprep.mubr.f32.mxu0 %v243
  %321 = vmatmul.mubr.f32.gmra.mrb[0].mxu0 %v242
  %v322 = vpop.f32.mrb[0].mxu0
  %v323 = vadd.f32 0.0, %v322
  %v324 = vpop.f32.mrb[0].mxu0
  %325 = vmatprep.mubr.f32.mxu0 %v245
  %326 = vmatmul.mubr.f32.gmra.mrb[0].mxu0 %v244
  %v327 = vpop.f32.mrb[0].mxu0
  %v328 = vadd.f32 0.0, %v327
  %v329 = vpop.f32.mrb[0].mxu0
  %330 = vdwg.mxu0
  %v331 = vmax.f32 %v233, %v313
  %v332 = vmax.f32 %v234, %v318
  %v333 = vmax.f32 %v235, %v323
  %v334 = vmax.f32 %v236, %v328
  %s335 = scalar_lea.vmem %s0, 192
  %v336 = vld [vmem:[%s335] sm:$0xff]
  %v337 = vld [vmem:[%s335 + $0x8] sm:$0xff]
  %v338 = vld [vmem:[%s335 + $0x10] sm:$0xff]
  %v339 = vld [vmem:[%s335 + $0x18] sm:$0xff]
  %v340 = vld [vmem:[%s335 + $0x20] sm:$0xff]
  %v341 = vld [vmem:[%s335 + $0x28] sm:$0xff]
  %v342 = vld [vmem:[%s335 + $0x30] sm:$0xff]
  %v343 = vld [vmem:[%s335 + $0x38] sm:$0xff]
  %344 = vmatprep.subr.mxu0 0.0
  %345 = vmatpush1.msra.mxu0 %v14
  %346 = vmatprep.subr.mxu0 0.0
  %347 = vmatpush1.msra.mxu0 %v15
  %348 = vmatprep.subr.mxu0 0.0
  %349 = vmatpush1.msra.mxu0 %v16
  %350 = vmatprep.subr.mxu0 0.0
  %351 = vmatpush1.msra.mxu0 %v17
  %352 = vmatprep.subr.mxu0 0.0
  %353 = vmatpush1.msra.mxu0 %v18
  %354 = vmatprep.subr.mxu0 0.0
  %355 = vmatpush1.msra.mxu0 %v19
  %356 = vmatprep.subr.mxu0 0.0
  %357 = vmatpush1.msra.mxu0 %v20
  %358 = vmatprep.subr.mxu0 0.0
  %359 = vmatpush1.msra.mxu0 %v21
  %360 = vmatprep.subr.mxu0 0.0
  %361 = vmatpush1.msra.mxu0 %v22
  %362 = vmatprep.subr.mxu0 0.0
  %363 = vmatpush1.msra.mxu0 %v23
  %364 = vmatprep.subr.mxu0 0.0
  %365 = vmatpush1.msra.mxu0 %v24
  %366 = vmatprep.subr.mxu0 0.0
  %367 = vmatpush1.msra.mxu0 %v25
  %368 = vmatprep.subr.mxu0 0.0
  %369 = vmatpush1.msra.mxu0 %v26
  %370 = vmatprep.subr.mxu0 0.0
  %371 = vmatpush1.msra.mxu0 %v27
  %372 = vmatprep.subr.mxu0 0.0
  %373 = vmatpush1.msra.mxu0 %v28
  %374 = vmatprep.subr.mxu0 0.0
  %375 = vmatpush1.msra.mxu0 %v29
  %376 = vmatprep.subr.mxu0 0.0
  %377 = vmatpush1.msra.mxu0 %v30
  %378 = vmatprep.subr.mxu0 0.0
  %379 = vmatpush1.msra.mxu0 %v31
  %380 = vmatprep.subr.mxu0 0.0
  %381 = vmatpush1.msra.mxu0 %v32
  %382 = vmatprep.subr.mxu0 0.0
  %383 = vmatpush1.msra.mxu0 %v33
  %384 = vmatprep.subr.mxu0 0.0
  %385 = vmatpush1.msra.mxu0 %v34
  %386 = vmatprep.subr.mxu0 0.0
  %387 = vmatpush1.msra.mxu0 %v35
  %388 = vmatprep.subr.mxu0 0.0
  %389 = vmatpush1.msra.mxu0 %v36
  %390 = vmatprep.subr.mxu0 0.0
  %391 = vmatpush1.msra.mxu0 %v37
  %392 = vmatprep.subr.mxu0 0.0
  %393 = vmatpush1.msra.mxu0 %v38
  %394 = vmatprep.subr.mxu0 0.0
  %395 = vmatpush1.msra.mxu0 %v39
  %396 = vmatprep.subr.mxu0 0.0
  %397 = vmatpush1.msra.mxu0 %v40
  %398 = vmatprep.subr.mxu0 0.0
  %399 = vmatpush1.msra.mxu0 %v41
  %400 = vmatprep.subr.mxu0 0.0
  %401 = vmatpush1.msra.mxu0 %v42
  %402 = vmatprep.subr.mxu0 0.0
  %403 = vmatpush1.msra.mxu0 %v43
  %404 = vmatprep.subr.mxu0 0.0
  %405 = vmatpush1.msra.mxu0 %v44
  %406 = vmatprep.subr.mxu0 0.0
  %407 = vmatpush1.msra.mxu0 %v45
  %408 = vmatprep.mubr.f32.mxu0 %v337
  %409 = vmatmul.mubr.f32.gmra.mrb[0].mxu0 %v336
  %v410 = vpop.f32.mrb[0].mxu0
  %v411 = vadd.f32 0.0, %v410
  %v412 = vpop.f32.mrb[0].mxu0
  %413 = vmatprep.mubr.f32.mxu0 %v339
  %414 = vmatmul.mubr.f32.gmra.mrb[0].mxu0 %v338
  %v415 = vpop.f32.mrb[0].mxu0
  %v416 = vadd.f32 0.0, %v415
  %v417 = vpop.f32.mrb[0].mxu0
  %418 = vmatprep.mubr.f32.mxu0 %v341
  %419 = vmatmul.mubr.f32.gmra.mrb[0].mxu0 %v340
  %v420 = vpop.f32.mrb[0].mxu0
  %v421 = vadd.f32 0.0, %v420
  %v422 = vpop.f32.mrb[0].mxu0
  %423 = vmatprep.mubr.f32.mxu0 %v343
  %424 = vmatmul.mubr.f32.gmra.mrb[0].mxu0 %v342
  %v425 = vpop.f32.mrb[0].mxu0
  %v426 = vadd.f32 0.0, %v425
  %v427 = vpop.f32.mrb[0].mxu0
  %428 = vdwg.mxu0
  %v429 = vmax.f32 %v331, %v411
  %v430 = vmax.f32 %v332, %v416
  %v431 = vmax.f32 %v333, %v421
  %v432 = vmax.f32 %v334, %v426
  %v433 = vld [vmem:[%s2] sm:$0x1]
  %v435 = vlaneseq
  %v436 = vshrl.u32 %v435, 7
  %v437 = vsub.s32 0, %v436
  %v438 = vrot.slane %v433, %v437
  %v440 = vadd.f32 %v429, %v438
  %v441 = vadd.f32 %v430, %v438
  %v442 = vadd.f32 %v431, %v438
  %v443 = vadd.f32 %v432, %v438
  %v444 = vmax.f32 %v440, 0.0
  %v445 = vmax.f32 %v441, 0.0
  %v446 = vmax.f32 %v442, 0.0
  %v447 = vmax.f32 %v443, 0.0
  %448 = vst [vmem:[%s3] sm:$0xff] %v444
  %449 = vst [vmem:[%s3 + $0x8] sm:$0xff] %v445
  %450 = vst [vmem:[%s3 + $0x10] sm:$0xff] %v446
  %451 = vst [vmem:[%s3 + $0x18] sm:$0xff] %v447
  // Predicated region
  $region14: #{net_forward.4} parent=0 // pred_check
    _
  $region15: #{net_forward.4} parent=0 // pred_check_branch
    %453 = sbr.rel (0) target = $region17
  $region16: #{net_forward.4} parent=0 // pred_region
    _
  $region17: #{net_forward.4} parent=0 // pred_fallthru
    _
  // Predicated region
  $region18: #{net_forward.4} parent=0 // pred_check
    _
  $region19: #{net_forward.4} parent=0 // pred_check_branch
    %455 = sbr.rel (0) target = $region21
  $region20: #{net_forward.4} parent=0 // pred_region
    _
  $region21: #{net_forward.4} parent=0 // pred_fallthru
    _

// kernel: net_forward.5
$region0: #{net_forward.5}
  #allocation0 [shape = 'u32[]', space=smem, size = 0x4, offset = 0x4, fixed_abs, tag = 'smem constant byte address 0x4 - core index']
  #allocation1 [shape = 'u32[144,128]{1,0:T(1,128)}', space=vmem, size = 0x12000, scoped, tag = 'internal scratch']
  %s0 = inlined_call_operand.vmem [shape: f32[8,2048], index: 0, kind: input, shape index: {}]
  %s1 = inlined_call_operand.vmem [shape: f32[2048,128], index: 1, kind: input, shape index: {}]
  %s2 = inlined_call_operand.vmem [shape: f32[1,128], index: 2, kind: input, shape index: {}]
  %s3 = inlined_call_operand.vmem [shape: f32[8,128], index: 3, kind: output, shape index: {}]
  %s4 = sld [smem:[#allocation0]]
  $region22: #{net_forward.5} parent=0
    _
  %s6 = ssub.s32 1, %s4
  %s7 = scalar_select 0, %s6, %s4
  // Predicated region
  $region2: #{net_forward.5} parent=0 // pred_check
    _
  $region3: #{net_forward.5} parent=0 // pred_check_branch
    %9 = sbr.rel (0) target = $region5
  $region4: #{net_forward.5} parent=0 // pred_region
    _
  $region5: #{net_forward.5} parent=0 // pred_fallthru
    _
  // Predicated region
  $region6: #{net_forward.5} parent=0 // pred_check
    _
  $region7: #{net_forward.5} parent=0 // pred_check_branch
    %11 = sbr.rel (0) target = $region9
  $region8: #{net_forward.5} parent=0 // pred_region
    _
  $region9: #{net_forward.5} parent=0 // pred_fallthru
    _
  // Predicated region
  $region10: #{net_forward.5} parent=0 // pred_check
    _
  $region11: #{net_forward.5} parent=0 // pred_check_branch
    %13 = sbr.rel (0) target = $region13
  $region12: #{net_forward.5} parent=0 // pred_region
    _
  $region13: #{net_forward.5} parent=0 // pred_fallthru
    _
  %v14 = vld [vmem:[%s0] sm:$0xff]
  %v15 = vld [vmem:[%s0 + $0x8] sm:$0xff]
  %v16 = vld [vmem:[%s0 + $0x10] sm:$0xff]
  %v17 = vld [vmem:[%s0 + $0x18] sm:$0xff]
  %v18 = vld [vmem:[%s0 + $0x20] sm:$0xff]
  %v19 = vld [vmem:[%s0 + $0x28] sm:$0xff]
  %v20 = vld [vmem:[%s0 + $0x30] sm:$0xff]
  %v21 = vld [vmem:[%s0 + $0x38] sm:$0xff]
  %v22 = vld [vmem:[%s0 + $0x40] sm:$0xff]
  %v23 = vld [vmem:[%s0 + $0x48] sm:$0xff]
  %v24 = vld [vmem:[%s0 + $0x50] sm:$0xff]
  %v25 = vld [vmem:[%s0 + $0x58] sm:$0xff]
  %v26 = vld [vmem:[%s0 + $0x60] sm:$0xff]
  %v27 = vld [vmem:[%s0 + $0x68] sm:$0xff]
  %v28 = vld [vmem:[%s0 + $0x70] sm:$0xff]
  %v29 = vld [vmem:[%s0 + $0x78] sm:$0xff]
  %v30 = vld [vmem:[%s1] sm:$0xff]
  %v31 = vld [vmem:[%s1 + $0x8] sm:$0xff]
  %v32 = vld [vmem:[%s1 + $0x10] sm:$0xff]
  %v33 = vld [vmem:[%s1 + $0x18] sm:$0xff]
  %v34 = vld [vmem:[%s1 + $0x20] sm:$0xff]
  %v35 = vld [vmem:[%s1 + $0x28] sm:$0xff]
  %v36 = vld [vmem:[%s1 + $0x30] sm:$0xff]
  %v37 = vld [vmem:[%s1 + $0x38] sm:$0xff]
  %v38 = vld [vmem:[%s1 + $0x40] sm:$0xff]
  %v39 = vld [vmem:[%s1 + $0x48] sm:$0xff]
  %v40 = vld [vmem:[%s1 + $0x50] sm:$0xff]
  %v41 = vld [vmem:[%s1 + $0x58] sm:$0xff]
  %v42 = vld [vmem:[%s1 + $0x60] sm:$0xff]
  %v43 = vld [vmem:[%s1 + $0x68] sm:$0xff]
  %v44 = vld [vmem:[%s1 + $0x70] sm:$0xff]
  %v45 = vld [vmem:[%s1 + $0x78] sm:$0xff]
  %v46 = vld [vmem:[%s1 + $0x80] sm:$0xff]
  %v47 = vld [vmem:[%s1 + $0x88] sm:$0xff]
  %v48 = vld [vmem:[%s1 + $0x90] sm:$0xff]
  %v49 = vld [vmem:[%s1 + $0x98] sm:$0xff]
  %v50 = vld [vmem:[%s1 + $0xa0] sm:$0xff]
  %v51 = vld [vmem:[%s1 + $0xa8] sm:$0xff]
  %v52 = vld [vmem:[%s1 + $0xb0] sm:$0xff]
  %v53 = vld [vmem:[%s1 + $0xb8] sm:$0xff]
  %v54 = vld [vmem:[%s1 + $0xc0] sm:$0xff]
  %v55 = vld [vmem:[%s1 + $0xc8] sm:$0xff]
  %v56 = vld [vmem:[%s1 + $0xd0] sm:$0xff]
  %v57 = vld [vmem:[%s1 + $0xd8] sm:$0xff]
  %v58 = vld [vmem:[%s1 + $0xe0] sm:$0xff]
  %v59 = vld [vmem:[%s1 + $0xe8] sm:$0xff]
  %v60 = vld [vmem:[%s1 + $0xf0] sm:$0xff]
  %v61 = vld [vmem:[%s1 + $0xf8] sm:$0xff]
  %v62 = vld [vmem:[%s1 + $0x100] sm:$0xff]
  %v63 = vld [vmem:[%s1 + $0x108] sm:$0xff]
  %v64 = vld [vmem:[%s1 + $0x110] sm:$0xff]
  %v65 = vld [vmem:[%s1 + $0x118] sm:$0xff]
  %v66 = vld [vmem:[%s1 + $0x120] sm:$0xff]
  %v67 = vld [vmem:[%s1 + $0x128] sm:$0xff]
  %v68 = vld [vmem:[%s1 + $0x130] sm:$0xff]
  %v69 = vld [vmem:[%s1 + $0x138] sm:$0xff]
  %v70 = vld [vmem:[%s1 + $0x140] sm:$0xff]
  %v71 = vld [vmem:[%s1 + $0x148] sm:$0xff]
  %v72 = vld [vmem:[%s1 + $0x150] sm:$0xff]
  %v73 = vld [vmem:[%s1 + $0x158] sm:$0xff]
  %v74 = vld [vmem:[%s1 + $0x160] sm:$0xff]
  %v75 = vld [vmem:[%s1 + $0x168] sm:$0xff]
  %v76 = vld [vmem:[%s1 + $0x170] sm:$0xff]
  %v77 = vld [vmem:[%s1 + $0x178] sm:$0xff]
  %v78 = vld [vmem:[%s1 + $0x180] sm:$0xff]
  %v79 = vld [vmem:[%s1 + $0x188] sm:$0xff]
  %v80 = vld [vmem:[%s1 + $0x190] sm:$0xff]
  %v81 = vld [vmem:[%s1 + $0x198] sm:$0xff]
  %v82 = vld [vmem:[%s1 + $0x1a0] sm:$0xff]
  %v83 = vld [vmem:[%s1 + $0x1a8] sm:$0xff]
  %v84 = vld [vmem:[%s1 + $0x1b0] sm:$0xff]
  %v85 = vld [vmem:[%s1 + $0x1b8] sm:$0xff]
  %v86 = vld [vmem:[%s1 + $0x1c0] sm:$0xff]
  %v87 = vld [vmem:[%s1 + $0x1c8] sm:$0xff]
  %v88 = vld [vmem:[%s1 + $0x1d0] sm:$0xff]
  %v89 = vld [vmem:[%s1 + $0x1d8] sm:$0xff]
  %v90 = vld [vmem:[%s1 + $0x1e0] sm:$0xff]
  %v91 = vld [vmem:[%s1 + $0x1e8] sm:$0xff]
  %v92 = vld [vmem:[%s1 + $0x1f0] sm:$0xff]
  %v93 = vld [vmem:[%s1 + $0x1f8] sm:$0xff]
  %v94 = vld [vmem:[%s1 + $0x200] sm:$0xff]
  %v95 = vld [vmem:[%s1 + $0x208] sm:$0xff]
  %v96 = vld [vmem:[%s1 + $0x210] sm:$0xff]
  %v97 = vld [vmem:[%s1 + $0x218] sm:$0xff]
  %v98 = vld [vmem:[%s1 + $0x220] sm:$0xff]
  %v99 = vld [vmem:[%s1 + $0x228] sm:$0xff]
  %v100 = vld [vmem:[%s1 + $0x230] sm:$0xff]
  %v101 = vld [vmem:[%s1 + $0x238] sm:$0xff]
  %v102 = vld [vmem:[%s1 + $0x240] sm:$0xff]
  %v103 = vld [vmem:[%s1 + $0x248] sm:$0xff]
  %v104 = vld [vmem:[%s1 + $0x250] sm:$0xff]
  %v105 = vld [vmem:[%s1 + $0x258] sm:$0xff]
  %v106 = vld [vmem:[%s1 + $0x260] sm:$0xff]
  %v107 = vld [vmem:[%s1 + $0x268] sm:$0xff]
  %v108 = vld [vmem:[%s1 + $0x270] sm:$0xff]
  %v109 = vld [vmem:[%s1 + $0x278] sm:$0xff]
  %v110 = vld [vmem:[%s1 + $0x280] sm:$0xff]
  %v111 = vld [vmem:[%s1 + $0x288] sm:$0xff]
  %v112 = vld [vmem:[%s1 + $0x290] sm:$0xff]
  %v113 = vld [vmem:[%s1 + $0x298] sm:$0xff]
  %v114 = vld [vmem:[%s1 + $0x2a0] sm:$0xff]
  %v115 = vld [vmem:[%s1 + $0x2a8] sm:$0xff]
  %v116 = vld [vmem:[%s1 + $0x2b0] sm:$0xff]
  %v117 = vld [vmem:[%s1 + $0x2b8] sm:$0xff]
  %v118 = vld [vmem:[%s1 + $0x2c0] sm:$0xff]
  %v119 = vld [vmem:[%s1 + $0x2c8] sm:$0xff]
  %v120 = vld [vmem:[%s1 + $0x2d0] sm:$0xff]
  %v121 = vld [vmem:[%s1 + $0x2d8] sm:$0xff]
  %v122 = vld [vmem:[%s1 + $0x2e0] sm:$0xff]
  %v123 = vld [vmem:[%s1 + $0x2e8] sm:$0xff]
  %v124 = vld [vmem:[%s1 + $0x2f0] sm:$0xff]
  %v125 = vld [vmem:[%s1 + $0x2f8] sm:$0xff]
  %v126 = vld [vmem:[%s1 + $0x300] sm:$0xff]
  %v127 = vld [vmem:[%s1 + $0x308] sm:$0xff]
  %v128 = vld [vmem:[%s1 + $0x310] sm:$0xff]
  %v129 = vld [vmem:[%s1 + $0x318] sm:$0xff]
  %v130 = vld [vmem:[%s1 + $0x320] sm:$0xff]
  %v131 = vld [vmem:[%s1 + $0x328] sm:$0xff]
  %v132 = vld [vmem:[%s1 + $0x330] sm:$0xff]
  %v133 = vld [vmem:[%s1 + $0x338] sm:$0xff]
  %v134 = vld [vmem:[%s1 + $0x340] sm:$0xff]
  %v135 = vld [vmem:[%s1 + $0x348] sm:$0xff]
  %v136 = vld [vmem:[%s1 + $0x350] sm:$0xff]
  %v137 = vld [vmem:[%s1 + $0x358] sm:$0xff]
  %v138 = vld [vmem:[%s1 + $0x360] sm:$0xff]
  %v139 = vld [vmem:[%s1 + $0x368] sm:$0xff]
  %v140 = vld [vmem:[%s1 + $0x370] sm:$0xff]
  %v141 = vld [vmem:[%s1 + $0x378] sm:$0xff]
  %v142 = vld [vmem:[%s1 + $0x380] sm:$0xff]
  %v143 = vld [vmem:[%s1 + $0x388] sm:$0xff]
  %v144 = vld [vmem:[%s1 + $0x390] sm:$0xff]
  %v145 = vld [vmem:[%s1 + $0x398] sm:$0xff]
  %v146 = vld [vmem:[%s1 + $0x3a0] sm:$0xff]
  %v147 = vld [vmem:[%s1 + $0x3a8] sm:$0xff]
  %v148 = vld [vmem:[%s1 + $0x3b0] sm:$0xff]
  %v149 = vld [vmem:[%s1 + $0x3b8] sm:$0xff]
  %v150 = vld [vmem:[%s1 + $0x3c0] sm:$0xff]
  %v151 = vld [vmem:[%s1 + $0x3c8] sm:$0xff]
  %v152 = vld [vmem:[%s1 + $0x3d0] sm:$0xff]
  %v153 = vld [vmem:[%s1 + $0x3d8] sm:$0xff]
  %v154 = vld [vmem:[%s1 + $0x3e0] sm:$0xff]
  %v155 = vld [vmem:[%s1 + $0x3e8] sm:$0xff]
  %v156 = vld [vmem:[%s1 + $0x3f0] sm:$0xff]
  %v157 = vld [vmem:[%s1 + $0x3f8] sm:$0xff]
  %v158 = vld [vmem:[%s1 + $0x400] sm:$0xff]
  %v159 = vld [vmem:[%s1 + $0x408] sm:$0xff]
  %v160 = vld [vmem:[%s1 + $0x410] sm:$0xff]
  %v161 = vld [vmem:[%s1 + $0x418] sm:$0xff]
  %v162 = vld [vmem:[%s1 + $0x420] sm:$0xff]
  %v163 = vld [vmem:[%s1 + $0x428] sm:$0xff]
  %v164 = vld [vmem:[%s1 + $0x430] sm:$0xff]
  %v165 = vld [vmem:[%s1 + $0x438] sm:$0xff]
  %v166 = vld [vmem:[%s1 + $0x440] sm:$0xff]
  %v167 = vld [vmem:[%s1 + $0x448] sm:$0xff]
  %v168 = vld [vmem:[%s1 + $0x450] sm:$0xff]
  %v169 = vld [vmem:[%s1 + $0x458] sm:$0xff]
  %v170 = vld [vmem:[%s1 + $0x460] sm:$0xff]
  %v171 = vld [vmem:[%s1 + $0x468] sm:$0xff]
  %v172 = vld [vmem:[%s1 + $0x470] sm:$0xff]
  %v173 = vld [vmem:[%s1 + $0x478] sm:$0xff]
  %v174 = vld [vmem:[%s1 + $0x480] sm:$0xff]
  %v175 = vld [vmem:[%s1 + $0x488] sm:$0xff]
  %v176 = vld [vmem:[%s1 + $0x490] sm:$0xff]
  %v177 = vld [vmem:[%s1 + $0x498] sm:$0xff]
  %v178 = vld [vmem:[%s1 + $0x4a0] sm:$0xff]
  %v179 = vld [vmem:[%s1 + $0x4a8] sm:$0xff]
  %v180 = vld [vmem:[%s1 + $0x4b0] sm:$0xff]
  %v181 = vld [vmem:[%s1 + $0x4b8] sm:$0xff]
  %v182 = vld [vmem:[%s1 + $0x4c0] sm:$0xff]
  %v183 = vld [vmem:[%s1 + $0x4c8] sm:$0xff]
  %v184 = vld [vmem:[%s1 + $0x4d0] sm:$0xff]
  %v185 = vld [vmem:[%s1 + $0x4d8] sm:$0xff]
  %v186 = vld [vmem:[%s1 + $0x4e0] sm:$0xff]
  %v187 = vld [vmem:[%s1 + $0x4e8] sm:$0xff]
  %v188 = vld [vmem:[%s1 + $0x4f0] sm:$0xff]
  %v189 = vld [vmem:[%s1 + $0x4f8] sm:$0xff]
  %v190 = vld [vmem:[%s1 + $0x500] sm:$0xff]
  %v191 = vld [vmem:[%s1 + $0x508] sm:$0xff]
  %v192 = vld [vmem:[%s1 + $0x510] sm:$0xff]
  %v193 = vld [vmem:[%s1 + $0x518] sm:$0xff]
  %v194 = vld [vmem:[%s1 + $0x520] sm:$0xff]
  %v195 = vld [vmem:[%s1 + $0x528] sm:$0xff]
  %v196 = vld [vmem:[%s1 + $0x530] sm:$0xff]
  %v197 = vld [vmem:[%s1 + $0x538] sm:$0xff]
  %v198 = vld [vmem:[%s1 + $0x540] sm:$0xff]
  %v199 = vld [vmem:[%s1 + $0x548] sm:$0xff]
  %v200 = vld [vmem:[%s1 + $0x550] sm:$0xff]
  %v201 = vld [vmem:[%s1 + $0x558] sm:$0xff]
  %v202 = vld [vmem:[%s1 + $0x560] sm:$0xff]
  %v203 = vld [vmem:[%s1 + $0x568] sm:$0xff]
  %v204 = vld [vmem:[%s1 + $0x570] sm:$0xff]
  %v205 = vld [vmem:[%s1 + $0x578] sm:$0xff]
  %v206 = vld [vmem:[%s1 + $0x580] sm:$0xff]
  %v207 = vld [vmem:[%s1 + $0x588] sm:$0xff]
  %v208 = vld [vmem:[%s1 + $0x590] sm:$0xff]
  %v209 = vld [vmem:[%s1 + $0x598] sm:$0xff]
  %v210 = vld [vmem:[%s1 + $0x5a0] sm:$0xff]
  %v211 = vld [vmem:[%s1 + $0x5a8] sm:$0xff]
  %v212 = vld [vmem:[%s1 + $0x5b0] sm:$0xff]
  %v213 = vld [vmem:[%s1 + $0x5b8] sm:$0xff]
  %v214 = vld [vmem:[%s1 + $0x5c0] sm:$0xff]
  %v215 = vld [vmem:[%s1 + $0x5c8] sm:$0xff]
  %v216 = vld [vmem:[%s1 + $0x5d0] sm:$0xff]
  %v217 = vld [vmem:[%s1 + $0x5d8] sm:$0xff]
  %v218 = vld [vmem:[%s1 + $0x5e0] sm:$0xff]
  %v219 = vld [vmem:[%s1 + $0x5e8] sm:$0xff]
  %v220 = vld [vmem:[%s1 + $0x5f0] sm:$0xff]
  %v221 = vld [vmem:[%s1 + $0x5f8] sm:$0xff]
  %v222 = vld [vmem:[%s1 + $0x600] sm:$0xff]
  %v223 = vld [vmem:[%s1 + $0x608] sm:$0xff]
  %v224 = vld [vmem:[%s1 + $0x610] sm:$0xff]
  %v225 = vld [vmem:[%s1 + $0x618] sm:$0xff]
  %v226 = vld [vmem:[%s1 + $0x620] sm:$0xff]
  %v227 = vld [vmem:[%s1 + $0x628] sm:$0xff]
  %v228 = vld [vmem:[%s1 + $0x630] sm:$0xff]
  %v229 = vld [vmem:[%s1 + $0x638] sm:$0xff]
  %v230 = vld [vmem:[%s1 + $0x640] sm:$0xff]
  %v231 = vld [vmem:[%s1 + $0x648] sm:$0xff]
  %v232 = vld [vmem:[%s1 + $0x650] sm:$0xff]
  %v233 = vld [vmem:[%s1 + $0x658] sm:$0xff]
  %v234 = vld [vmem:[%s1 + $0x660] sm:$0xff]
  %v235 = vld [vmem:[%s1 + $0x668] sm:$0xff]
  %v236 = vld [vmem:[%s1 + $0x670] sm:$0xff]
  %v237 = vld [vmem:[%s1 + $0x678] sm:$0xff]
  %v238 = vld [vmem:[%s1 + $0x680] sm:$0xff]
  %v239 = vld [vmem:[%s1 + $0x688] sm:$0xff]
  %v240 = vld [vmem:[%s1 + $0x690] sm:$0xff]
  %v241 = vld [vmem:[%s1 + $0x698] sm:$0xff]
  %v242 = vld [vmem:[%s1 + $0x6a0] sm:$0xff]
  %v243 = vld [vmem:[%s1 + $0x6a8] sm:$0xff]
  %v244 = vld [vmem:[%s1 + $0x6b0] sm:$0xff]
  %v245 = vld [vmem:[%s1 + $0x6b8] sm:$0xff]
  %v246 = vld [vmem:[%s1 + $0x6c0] sm:$0xff]
  %v247 = vld [vmem:[%s1 + $0x6c8] sm:$0xff]
  %v248 = vld [vmem:[%s1 + $0x6d0] sm:$0xff]
  %v249 = vld [vmem:[%s1 + $0x6d8] sm:$0xff]
  %v250 = vld [vmem:[%s1 + $0x6e0] sm:$0xff]
  %v251 = vld [vmem:[%s1 + $0x6e8] sm:$0xff]
  %v252 = vld [vmem:[%s1 + $0x6f0] sm:$0xff]
  %v253 = vld [vmem:[%s1 + $0x6f8] sm:$0xff]
  %v254 = vld [vmem:[%s1 + $0x700] sm:$0xff]
  %v255 = vld [vmem:[%s1 + $0x708] sm:$0xff]
  %v256 = vld [vmem:[%s1 + $0x710] sm:$0xff]
  %v257 = vld [vmem:[%s1 + $0x718] sm:$0xff]
  %v258 = vld [vmem:[%s1 + $0x720] sm:$0xff]
  %v259 = vld [vmem:[%s1 + $0x728] sm:$0xff]
  %v260 = vld [vmem:[%s1 + $0x730] sm:$0xff]
  %v261 = vld [vmem:[%s1 + $0x738] sm:$0xff]
  %v262 = vld [vmem:[%s1 + $0x740] sm:$0xff]
  %v263 = vld [vmem:[%s1 + $0x748] sm:$0xff]
  %v264 = vld [vmem:[%s1 + $0x750] sm:$0xff]
  %v265 = vld [vmem:[%s1 + $0x758] sm:$0xff]
  %v266 = vld [vmem:[%s1 + $0x760] sm:$0xff]
  %v267 = vld [vmem:[%s1 + $0x768] sm:$0xff]
  %v268 = vld [vmem:[%s1 + $0x770] sm:$0xff]
  %v269 = vld [vmem:[%s1 + $0x778] sm:$0xff]
  %v270 = vld [vmem:[%s1 + $0x780] sm:$0xff]
  %v271 = vld [vmem:[%s1 + $0x788] sm:$0xff]
  %v272 = vld [vmem:[%s1 + $0x790] sm:$0xff]
  %v273 = vld [vmem:[%s1 + $0x798] sm:$0xff]
  %v274 = vld [vmem:[%s1 + $0x7a0] sm:$0xff]
  %v275 = vld [vmem:[%s1 + $0x7a8] sm:$0xff]
  %v276 = vld [vmem:[%s1 + $0x7b0] sm:$0xff]
  %v277 = vld [vmem:[%s1 + $0x7b8] sm:$0xff]
  %v278 = vld [vmem:[%s1 + $0x7c0] sm:$0xff]
  %v279 = vld [vmem:[%s1 + $0x7c8] sm:$0xff]
  %v280 = vld [vmem:[%s1 + $0x7d0] sm:$0xff]
  %v281 = vld [vmem:[%s1 + $0x7d8] sm:$0xff]
  %v282 = vld [vmem:[%s1 + $0x7e0] sm:$0xff]
  %v283 = vld [vmem:[%s1 + $0x7e8] sm:$0xff]
  %v284 = vld [vmem:[%s1 + $0x7f0] sm:$0xff]
  %v285 = vld [vmem:[%s1 + $0x7f8] sm:$0xff]
  %v286 = vld [vmem:[%s2] sm:$0x1]
  %v288 = vlaneseq
  %v289 = vshrl.u32 %v288, 7
  %v290 = vsub.s32 0, %v289
  %v291 = vrot.slane %v286, %v290
  %293 = vmatprep.subr.mxu0 0.0
  %294 = vmatpush1.msra.mxu0 %v30
  %295 = vmatprep.subr.mxu0 0.0
  %296 = vmatpush1.msra.mxu0 %v31
  %297 = vmatprep.subr.mxu0 0.0
  %298 = vmatpush1.msra.mxu0 %v32
  %299 = vmatprep.subr.mxu0 0.0
  %300 = vmatpush1.msra.mxu0 %v33
  %301 = vmatprep.subr.mxu0 0.0
  %302 = vmatpush1.msra.mxu0 %v34
  %303 = vmatprep.subr.mxu0 0.0
  %304 = vmatpush1.msra.mxu0 %v35
  %305 = vmatprep.subr.mxu0 0.0
  %306 = vmatpush1.msra.mxu0 %v36
  %307 = vmatprep.subr.mxu0 0.0
  %308 = vmatpush1.msra.mxu0 %v37
  %309 = vmatprep.subr.mxu0 0.0
  %310 = vmatpush1.msra.mxu0 %v38
  %311 = vmatprep.subr.mxu0 0.0
  %312 = vmatpush1.msra.mxu0 %v39
  %313 = vmatprep.subr.mxu0 0.0
  %314 = vmatpush1.msra.mxu0 %v40
  %315 = vmatprep.subr.mxu0 0.0
  %316 = vmatpush1.msra.mxu0 %v41
  %317 = vmatprep.subr.mxu0 0.0
  %318 = vmatpush1.msra.mxu0 %v42
  %319 = vmatprep.subr.mxu0 0.0
  %320 = vmatpush1.msra.mxu0 %v43
  %321 = vmatprep.subr.mxu0 0.0
  %322 = vmatpush1.msra.mxu0 %v44
  %323 = vmatprep.subr.mxu0 0.0
  %324 = vmatpush1.msra.mxu0 %v45
  %325 = vmatprep.subr.mxu0 0.0
  %326 = vmatpush1.msra.mxu0 %v46
  %327 = vmatprep.subr.mxu0 0.0
  %328 = vmatpush1.msra.mxu0 %v47
  %329 = vmatprep.subr.mxu0 0.0
  %330 = vmatpush1.msra.mxu0 %v48
  %331 = vmatprep.subr.mxu0 0.0
  %332 = vmatpush1.msra.mxu0 %v49
  %333 = vmatprep.subr.mxu0 0.0
  %334 = vmatpush1.msra.mxu0 %v50
  %335 = vmatprep.subr.mxu0 0.0
  %336 = vmatpush1.msra.mxu0 %v51
  %337 = vmatprep.subr.mxu0 0.0
  %338 = vmatpush1.msra.mxu0 %v52
  %339 = vmatprep.subr.mxu0 0.0
  %340 = vmatpush1.msra.mxu0 %v53
  %341 = vmatprep.subr.mxu0 0.0
  %342 = vmatpush1.msra.mxu0 %v54
  %343 = vmatprep.subr.mxu0 0.0
  %344 = vmatpush1.msra.mxu0 %v55
  %345 = vmatprep.subr.mxu0 0.0
  %346 = vmatpush1.msra.mxu0 %v56
  %347 = vmatprep.subr.mxu0 0.0
  %348 = vmatpush1.msra.mxu0 %v57
  %349 = vmatprep.subr.mxu0 0.0
  %350 = vmatpush1.msra.mxu0 %v58
  %351 = vmatprep.subr.mxu0 0.0
  %352 = vmatpush1.msra.mxu0 %v59
  %353 = vmatprep.subr.mxu0 0.0
  %354 = vmatpush1.msra.mxu0 %v60
  %355 = vmatprep.subr.mxu0 0.0
  %356 = vmatpush1.msra.mxu0 %v61
  %357 = vmatprep.mubr.f32.mxu0 %v15
  %358 = vmatmul.mubr.f32.gmra.mrb[0].mxu0 %v14
  %v359 = vpop.f32.mrb[0].mxu0
  %v360 = vadd.f32 %v291, %v359
  %v361 = vpop.f32.mrb[0].mxu0
  %362 = vdwg.mxu0
  %363 = vmatprep.subr.mxu0 0.0
  %364 = vmatpush1.msra.mxu0 %v62
  %365 = vmatprep.subr.mxu0 0.0
  %366 = vmatpush1.msra.mxu0 %v63
  %367 = vmatprep.subr.mxu0 0.0
  %368 = vmatpush1.msra.mxu0 %v64
  %369 = vmatprep.subr.mxu0 0.0
  %370 = vmatpush1.msra.mxu0 %v65
  %371 = vmatprep.subr.mxu0 0.0
  %372 = vmatpush1.msra.mxu0 %v66
  %373 = vmatprep.subr.mxu0 0.0
  %374 = vmatpush1.msra.mxu0 %v67
  %375 = vmatprep.subr.mxu0 0.0
  %376 = vmatpush1.msra.mxu0 %v68
  %377 = vmatprep.subr.mxu0 0.0
  %378 = vmatpush1.msra.mxu0 %v69
  %379 = vmatprep.subr.mxu0 0.0
  %380 = vmatpush1.msra.mxu0 %v70
  %381 = vmatprep.subr.mxu0 0.0
  %382 = vmatpush1.msra.mxu0 %v71
  %383 = vmatprep.subr.mxu0 0.0
  %384 = vmatpush1.msra.mxu0 %v72
  %385 = vmatprep.subr.mxu0 0.0
  %386 = vmatpush1.msra.mxu0 %v73
  %387 = vmatprep.subr.mxu0 0.0
  %388 = vmatpush1.msra.mxu0 %v74
  %389 = vmatprep.subr.mxu0 0.0
  %390 = vmatpush1.msra.mxu0 %v75
  %391 = vmatprep.subr.mxu0 0.0
  %392 = vmatpush1.msra.mxu0 %v76
  %393 = vmatprep.subr.mxu0 0.0
  %394 = vmatpush1.msra.mxu0 %v77
  %395 = vmatprep.subr.mxu0 0.0
  %396 = vmatpush1.msra.mxu0 %v78
  %397 = vmatprep.subr.mxu0 0.0
  %398 = vmatpush1.msra.mxu0 %v79
  %399 = vmatprep.subr.mxu0 0.0
  %400 = vmatpush1.msra.mxu0 %v80
  %401 = vmatprep.subr.mxu0 0.0
  %402 = vmatpush1.msra.mxu0 %v81
  %403 = vmatprep.subr.mxu0 0.0
  %404 = vmatpush1.msra.mxu0 %v82
  %405 = vmatprep.subr.mxu0 0.0
  %406 = vmatpush1.msra.mxu0 %v83
  %407 = vmatprep.subr.mxu0 0.0
  %408 = vmatpush1.msra.mxu0 %v84
  %409 = vmatprep.subr.mxu0 0.0
  %410 = vmatpush1.msra.mxu0 %v85
  %411 = vmatprep.subr.mxu0 0.0
  %412 = vmatpush1.msra.mxu0 %v86
  %413 = vmatprep.subr.mxu0 0.0
  %414 = vmatpush1.msra.mxu0 %v87
  %415 = vmatprep.subr.mxu0 0.0
  %416 = vmatpush1.msra.mxu0 %v88
  %417 = vmatprep.subr.mxu0 0.0
  %418 = vmatpush1.msra.mxu0 %v89
  %419 = vmatprep.subr.mxu0 0.0
  %420 = vmatpush1.msra.mxu0 %v90
  %421 = vmatprep.subr.mxu0 0.0
  %422 = vmatpush1.msra.mxu0 %v91
  %423 = vmatprep.subr.mxu0 0.0
  %424 = vmatpush1.msra.mxu0 %v92
  %425 = vmatprep.subr.mxu0 0.0
  %426 = vmatpush1.msra.mxu0 %v93
  %427 = vmatprep.mubr.f32.mxu0 %v17
  %428 = vmatmul.mubr.f32.gmra.mrb[0].mxu0 %v16
  %v429 = vpop.f32.mrb[0].mxu0
  %v430 = vadd.f32 %v360, %v429
  %v431 = vpop.f32.mrb[0].mxu0
  %432 = vdwg.mxu0
  %433 = vmatprep.subr.mxu0 0.0
  %434 = vmatpush1.msra.mxu0 %v94
  %435 = vmatprep.subr.mxu0 0.0
  %436 = vmatpush1.msra.mxu0 %v95
  %437 = vmatprep.subr.mxu0 0.0
  %438 = vmatpush1.msra.mxu0 %v96
  %439 = vmatprep.subr.mxu0 0.0
  %440 = vmatpush1.msra.mxu0 %v97
  %441 = vmatprep.subr.mxu0 0.0
  %442 = vmatpush1.msra.mxu0 %v98
  %443 = vmatprep.subr.mxu0 0.0
  %444 = vmatpush1.msra.mxu0 %v99
  %445 = vmatprep.subr.mxu0 0.0
  %446 = vmatpush1.msra.mxu0 %v100
  %447 = vmatprep.subr.mxu0 0.0
  %448 = vmatpush1.msra.mxu0 %v101
  %449 = vmatprep.subr.mxu0 0.0
  %450 = vmatpush1.msra.mxu0 %v102
  %451 = vmatprep.subr.mxu0 0.0
  %452 = vmatpush1.msra.mxu0 %v103
  %453 = vmatprep.subr.mxu0 0.0
  %454 = vmatpush1.msra.mxu0 %v104
  %455 = vmatprep.subr.mxu0 0.0
  %456 = vmatpush1.msra.mxu0 %v105
  %457 = vmatprep.subr.mxu0 0.0
  %458 = vmatpush1.msra.mxu0 %v106
  %459 = vmatprep.subr.mxu0 0.0
  %460 = vmatpush1.msra.mxu0 %v107
  %461 = vmatprep.subr.mxu0 0.0
  %462 = vmatpush1.msra.mxu0 %v108
  %463 = vmatprep.subr.mxu0 0.0
  %464 = vmatpush1.msra.mxu0 %v109
  %465 = vmatprep.subr.mxu0 0.0
  %466 = vmatpush1.msra.mxu0 %v110
  %467 = vmatprep.subr.mxu0 0.0
  %468 = vmatpush1.msra.mxu0 %v111
  %469 = vmatprep.subr.mxu0 0.0
  %470 = vmatpush1.msra.mxu0 %v112
  %471 = vmatprep.subr.mxu0 0.0
  %472 = vmatpush1.msra.mxu0 %v113
  %473 = vmatprep.subr.mxu0 0.0
  %474 = vmatpush1.msra.mxu0 %v114
  %475 = vmatprep.subr.mxu0 0.0
  %476 = vmatpush1.msra.mxu0 %v115
  %477 = vmatprep.subr.mxu0 0.0
  %478 = vmatpush1.msra.mxu0 %v116
  %479 = vmatprep.subr.mxu0 0.0
  %480 = vmatpush1.msra.mxu0 %v117
  %481 = vmatprep.subr.mxu0 0.0
  %482 = vmatpush1.msra.mxu0 %v118
  %483 = vmatprep.subr.mxu0 0.0
  %484 = vmatpush1.msra.mxu0 %v119
  %485 = vmatprep.subr.mxu0 0.0
  %486 = vmatpush1.msra.mxu0 %v120
  %487 = vmatprep.subr.mxu0 0.0
  %488 = vmatpush1.msra.mxu0 %v121
  %489 = vmatprep.subr.mxu0 0.0
  %490 = vmatpush1.msra.mxu0 %v122
  %491 = vmatprep.subr.mxu0 0.0
  %492 = vmatpush1.msra.mxu0 %v123
  %493 = vmatprep.subr.mxu0 0.0
  %494 = vmatpush1.msra.mxu0 %v124
  %495 = vmatprep.subr.mxu0 0.0
  %496 = vmatpush1.msra.mxu0 %v125
  %497 = vmatprep.mubr.f32.mxu0 %v19
  %498 = vmatmul.mubr.f32.gmra.mrb[0].mxu0 %v18
  %v499 = vpop.f32.mrb[0].mxu0
  %v500 = vadd.f32 %v430, %v499
  %v501 = vpop.f32.mrb[0].mxu0
  %502 = vdwg.mxu0
  %503 = vmatprep.subr.mxu0 0.0
  %504 = vmatpush1.msra.mxu0 %v126
  %505 = vmatprep.subr.mxu0 0.0
  %506 = vmatpush1.msra.mxu0 %v127
  %507 = vmatprep.subr.mxu0 0.0
  %508 = vmatpush1.msra.mxu0 %v128
  %509 = vmatprep.subr.mxu0 0.0
  %510 = vmatpush1.msra.mxu0 %v129
  %511 = vmatprep.subr.mxu0 0.0
  %512 = vmatpush1.msra.mxu0 %v130
  %513 = vmatprep.subr.mxu0 0.0
  %514 = vmatpush1.msra.mxu0 %v131
  %515 = vmatprep.subr.mxu0 0.0
  %516 = vmatpush1.msra.mxu0 %v132
  %517 = vmatprep.subr.mxu0 0.0
  %518 = vmatpush1.msra.mxu0 %v133
  %519 = vmatprep.subr.mxu0 0.0
  %520 = vmatpush1.msra.mxu0 %v134
  %521 = vmatprep.subr.mxu0 0.0
  %522 = vmatpush1.msra.mxu0 %v135
  %523 = vmatprep.subr.mxu0 0.0
  %524 = vmatpush1.msra.mxu0 %v136
  %525 = vmatprep.subr.mxu0 0.0
  %526 = vmatpush1.msra.mxu0 %v137
  %527 = vmatprep.subr.mxu0 0.0
  %528 = vmatpush1.msra.mxu0 %v138
  %529 = vmatprep.subr.mxu0 0.0
  %530 = vmatpush1.msra.mxu0 %v139
  %531 = vmatprep.subr.mxu0 0.0
  %532 = vmatpush1.msra.mxu0 %v140
  %533 = vmatprep.subr.mxu0 0.0
  %534 = vmatpush1.msra.mxu0 %v141
  %535 = vmatprep.subr.mxu0 0.0
  %536 = vmatpush1.msra.mxu0 %v142
  %537 = vmatprep.subr.mxu0 0.0
  %538 = vmatpush1.msra.mxu0 %v143
  %539 = vmatprep.subr.mxu0 0.0
  %540 = vmatpush1.msra.mxu0 %v144
  %541 = vmatprep.subr.mxu0 0.0
  %542 = vmatpush1.msra.mxu0 %v145
  %543 = vmatprep.subr.mxu0 0.0
  %544 = vmatpush1.msra.mxu0 %v146
  %545 = vmatprep.subr.mxu0 0.0
  %546 = vmatpush1.msra.mxu0 %v147
  %547 = vmatprep.subr.mxu0 0.0
  %548 = vmatpush1.msra.mxu0 %v148
  %549 = vmatprep.subr.mxu0 0.0
  %550 = vmatpush1.msra.mxu0 %v149
  %551 = vmatprep.subr.mxu0 0.0
  %552 = vmatpush1.msra.mxu0 %v150
  %553 = vmatprep.subr.mxu0 0.0
  %554 = vmatpush1.msra.mxu0 %v151
  %555 = vmatprep.subr.mxu0 0.0
  %556 = vmatpush1.msra.mxu0 %v152
  %557 = vmatprep.subr.mxu0 0.0
  %558 = vmatpush1.msra.mxu0 %v153
  %559 = vmatprep.subr.mxu0 0.0
  %560 = vmatpush1.msra.mxu0 %v154
  %561 = vmatprep.subr.mxu0 0.0
  %562 = vmatpush1.msra.mxu0 %v155
  %563 = vmatprep.subr.mxu0 0.0
  %564 = vmatpush1.msra.mxu0 %v156
  %565 = vmatprep.subr.mxu0 0.0
  %566 = vmatpush1.msra.mxu0 %v157
  %567 = vmatprep.mubr.f32.mxu0 %v21
  %568 = vmatmul.mubr.f32.gmra.mrb[0].mxu0 %v20
  %v569 = vpop.f32.mrb[0].mxu0
  %v570 = vadd.f32 %v500, %v569
  %v571 = vpop.f32.mrb[0].mxu0
  %572 = vdwg.mxu0
  %573 = vmatprep.subr.mxu0 0.0
  %574 = vmatpush1.msra.mxu0 %v158
  %575 = vmatprep.subr.mxu0 0.0
  %576 = vmatpush1.msra.mxu0 %v159
  %577 = vmatprep.subr.mxu0 0.0
  %578 = vmatpush1.msra.mxu0 %v160
  %579 = vmatprep.subr.mxu0 0.0
  %580 = vmatpush1.msra.mxu0 %v161
  %581 = vmatprep.subr.mxu0 0.0
  %582 = vmatpush1.msra.mxu0 %v162
  %583 = vmatprep.subr.mxu0 0.0
  %584 = vmatpush1.msra.mxu0 %v163
  %585 = vmatprep.subr.mxu0 0.0
  %586 = vmatpush1.msra.mxu0 %v164
  %587 = vmatprep.subr.mxu0 0.0
  %588 = vmatpush1.msra.mxu0 %v165
  %589 = vmatprep.subr.mxu0 0.0
  %590 = vmatpush1.msra.mxu0 %v166
  %591 = vmatprep.subr.mxu0 0.0
  %592 = vmatpush1.msra.mxu0 %v167
  %593 = vmatprep.subr.mxu0 0.0
  %594 = vmatpush1.msra.mxu0 %v168
  %595 = vmatprep.subr.mxu0 0.0
  %596 = vmatpush1.msra.mxu0 %v169
  %597 = vmatprep.subr.mxu0 0.0
  %598 = vmatpush1.msra.mxu0 %v170
  %599 = vmatprep.subr.mxu0 0.0
  %600 = vmatpush1.msra.mxu0 %v171
  %601 = vmatprep.subr.mxu0 0.0
  %602 = vmatpush1.msra.mxu0 %v172
  %603 = vmatprep.subr.mxu0 0.0
  %604 = vmatpush1.msra.mxu0 %v173
  %605 = vmatprep.subr.mxu0 0.0
  %606 = vmatpush1.msra.mxu0 %v174
  %607 = vmatprep.subr.mxu0 0.0
  %608 = vmatpush1.msra.mxu0 %v175
  %609 = vmatprep.subr.mxu0 0.0
  %610 = vmatpush1.msra.mxu0 %v176
  %611 = vmatprep.subr.mxu0 0.0
  %612 = vmatpush1.msra.mxu0 %v177
  %613 = vmatprep.subr.mxu0 0.0
  %614 = vmatpush1.msra.mxu0 %v178
  %615 = vmatprep.subr.mxu0 0.0
  %616 = vmatpush1.msra.mxu0 %v179
  %617 = vmatprep.subr.mxu0 0.0
  %618 = vmatpush1.msra.mxu0 %v180
  %619 = vmatprep.subr.mxu0 0.0
  %620 = vmatpush1.msra.mxu0 %v181
  %621 = vmatprep.subr.mxu0 0.0
  %622 = vmatpush1.msra.mxu0 %v182
  %623 = vmatprep.subr.mxu0 0.0
  %624 = vmatpush1.msra.mxu0 %v183
  %625 = vmatprep.subr.mxu0 0.0
  %626 = vmatpush1.msra.mxu0 %v184
  %627 = vmatprep.subr.mxu0 0.0
  %628 = vmatpush1.msra.mxu0 %v185
  %629 = vmatprep.subr.mxu0 0.0
  %630 = vmatpush1.msra.mxu0 %v186
  %631 = vmatprep.subr.mxu0 0.0
  %632 = vmatpush1.msra.mxu0 %v187
  %633 = vmatprep.subr.mxu0 0.0
  %634 = vmatpush1.msra.mxu0 %v188
  %635 = vmatprep.subr.mxu0 0.0
  %636 = vmatpush1.msra.mxu0 %v189
  %637 = vmatprep.mubr.f32.mxu0 %v23
  %638 = vmatmul.mubr.f32.gmra.mrb[0].mxu0 %v22
  %v639 = vpop.f32.mrb[0].mxu0
  %v640 = vadd.f32 %v570, %v639
  %v641 = vpop.f32.mrb[0].mxu0
  %642 = vdwg.mxu0
  %643 = vmatprep.subr.mxu0 0.0
  %644 = vmatpush1.msra.mxu0 %v190
  %645 = vmatprep.subr.mxu0 0.0
  %646 = vmatpush1.msra.mxu0 %v191
  %647 = vmatprep.subr.mxu0 0.0
  %648 = vmatpush1.msra.mxu0 %v192
  %649 = vmatprep.subr.mxu0 0.0
  %650 = vmatpush1.msra.mxu0 %v193
  %651 = vmatprep.subr.mxu0 0.0
  %652 = vmatpush1.msra.mxu0 %v194
  %653 = vmatprep.subr.mxu0 0.0
  %654 = vmatpush1.msra.mxu0 %v195
  %655 = vmatprep.subr.mxu0 0.0
  %656 = vmatpush1.msra.mxu0 %v196
  %657 = vmatprep.subr.mxu0 0.0
  %658 = vmatpush1.msra.mxu0 %v197
  %659 = vmatprep.subr.mxu0 0.0
  %660 = vmatpush1.msra.mxu0 %v198
  %661 = vmatprep.subr.mxu0 0.0
  %662 = vmatpush1.msra.mxu0 %v199
  %663 = vmatprep.subr.mxu0 0.0
  %664 = vmatpush1.msra.mxu0 %v200
  %665 = vmatprep.subr.mxu0 0.0
  %666 = vmatpush1.msra.mxu0 %v201
  %667 = vmatprep.subr.mxu0 0.0
  %668 = vmatpush1.msra.mxu0 %v202
  %669 = vmatprep.subr.mxu0 0.0
  %670 = vmatpush1.msra.mxu0 %v203
  %671 = vmatprep.subr.mxu0 0.0
  %672 = vmatpush1.msra.mxu0 %v204
  %673 = vmatprep.subr.mxu0 0.0
  %674 = vmatpush1.msra.mxu0 %v205
  %675 = vmatprep.subr.mxu0 0.0
  %676 = vmatpush1.msra.mxu0 %v206
  %677 = vmatprep.subr.mxu0 0.0
  %678 = vmatpush1.msra.mxu0 %v207
  %679 = vmatprep.subr.mxu0 0.0
  %680 = vmatpush1.msra.mxu0 %v208
  %681 = vmatprep.subr.mxu0 0.0
  %682 = vmatpush1.msra.mxu0 %v209
  %683 = vmatprep.subr.mxu0 0.0
  %684 = vmatpush1.msra.mxu0 %v210
  %685 = vmatprep.subr.mxu0 0.0
  %686 = vmatpush1.msra.mxu0 %v211
  %687 = vmatprep.subr.mxu0 0.0
  %688 = vmatpush1.msra.mxu0 %v212
  %689 = vmatprep.subr.mxu0 0.0
  %690 = vmatpush1.msra.mxu0 %v213
  %691 = vmatprep.subr.mxu0 0.0
  %692 = vmatpush1.msra.mxu0 %v214
  %693 = vmatprep.subr.mxu0 0.0
  %694 = vmatpush1.msra.mxu0 %v215
  %695 = vmatprep.subr.mxu0 0.0
  %696 = vmatpush1.msra.mxu0 %v216
  %697 = vmatprep.subr.mxu0 0.0
  %698 = vmatpush1.msra.mxu0 %v217
  %699 = vmatprep.subr.mxu0 0.0
  %700 = vmatpush1.msra.mxu0 %v218
  %701 = vmatprep.subr.mxu0 0.0
  %702 = vmatpush1.msra.mxu0 %v219
  %703 = vmatprep.subr.mxu0 0.0
  %704 = vmatpush1.msra.mxu0 %v220
  %705 = vmatprep.subr.mxu0 0.0
  %706 = vmatpush1.msra.mxu0 %v221
  %707 = vmatprep.mubr.f32.mxu0 %v25
  %708 = vmatmul.mubr.f32.gmra.mrb[0].mxu0 %v24
  %v709 = vpop.f32.mrb[0].mxu0
  %v710 = vadd.f32 %v640, %v709
  %v711 = vpop.f32.mrb[0].mxu0
  %712 = vdwg.mxu0
  %713 = vmatprep.subr.mxu0 0.0
  %714 = vmatpush1.msra.mxu0 %v222
  %715 = vmatprep.subr.mxu0 0.0
  %716 = vmatpush1.msra.mxu0 %v223
  %717 = vmatprep.subr.mxu0 0.0
  %718 = vmatpush1.msra.mxu0 %v224
  %719 = vmatprep.subr.mxu0 0.0
  %720 = vmatpush1.msra.mxu0 %v225
  %721 = vmatprep.subr.mxu0 0.0
  %722 = vmatpush1.msra.mxu0 %v226
  %723 = vmatprep.subr.mxu0 0.0
  %724 = vmatpush1.msra.mxu0 %v227
  %725 = vmatprep.subr.mxu0 0.0
  %726 = vmatpush1.msra.mxu0 %v228
  %727 = vmatprep.subr.mxu0 0.0
  %728 = vmatpush1.msra.mxu0 %v229
  %729 = vmatprep.subr.mxu0 0.0
  %730 = vmatpush1.msra.mxu0 %v230
  %731 = vmatprep.subr.mxu0 0.0
  %732 = vmatpush1.msra.mxu0 %v231
  %733 = vmatprep.subr.mxu0 0.0
  %734 = vmatpush1.msra.mxu0 %v232
  %735 = vmatprep.subr.mxu0 0.0
  %736 = vmatpush1.msra.mxu0 %v233
  %737 = vmatprep.subr.mxu0 0.0
  %738 = vmatpush1.msra.mxu0 %v234
  %739 = vmatprep.subr.mxu0 0.0
  %740 = vmatpush1.msra.mxu0 %v235
  %741 = vmatprep.subr.mxu0 0.0
  %742 = vmatpush1.msra.mxu0 %v236
  %743 = vmatprep.subr.mxu0 0.0
  %744 = vmatpush1.msra.mxu0 %v237
  %745 = vmatprep.subr.mxu0 0.0
  %746 = vmatpush1.msra.mxu0 %v238
  %747 = vmatprep.subr.mxu0 0.0
  %748 = vmatpush1.msra.mxu0 %v239
  %749 = vmatprep.subr.mxu0 0.0
  %750 = vmatpush1.msra.mxu0 %v240
  %751 = vmatprep.subr.mxu0 0.0
  %752 = vmatpush1.msra.mxu0 %v241
  %753 = vmatprep.subr.mxu0 0.0
  %754 = vmatpush1.msra.mxu0 %v242
  %755 = vmatprep.subr.mxu0 0.0
  %756 = vmatpush1.msra.mxu0 %v243
  %757 = vmatprep.subr.mxu0 0.0
  %758 = vmatpush1.msra.mxu0 %v244
  %759 = vmatprep.subr.mxu0 0.0
  %760 = vmatpush1.msra.mxu0 %v245
  %761 = vmatprep.subr.mxu0 0.0
  %762 = vmatpush1.msra.mxu0 %v246
  %763 = vmatprep.subr.mxu0 0.0
  %764 = vmatpush1.msra.mxu0 %v247
  %765 = vmatprep.subr.mxu0 0.0
  %766 = vmatpush1.msra.mxu0 %v248
  %767 = vmatprep.subr.mxu0 0.0
  %768 = vmatpush1.msra.mxu0 %v249
  %769 = vmatprep.subr.mxu0 0.0
  %770 = vmatpush1.msra.mxu0 %v250
  %771 = vmatprep.subr.mxu0 0.0
  %772 = vmatpush1.msra.mxu0 %v251
  %773 = vmatprep.subr.mxu0 0.0
  %774 = vmatpush1.msra.mxu0 %v252
  %775 = vmatprep.subr.mxu0 0.0
  %776 = vmatpush1.msra.mxu0 %v253
  %777 = vmatprep.mubr.f32.mxu0 %v27
  %778 = vmatmul.mubr.f32.gmra.mrb[0].mxu0 %v26
  %v779 = vpop.f32.mrb[0].mxu0
  %v780 = vadd.f32 %v710, %v779
  %v781 = vpop.f32.mrb[0].mxu0
  %782 = vdwg.mxu0
  %783 = vmatprep.subr.mxu0 0.0
  %784 = vmatpush1.msra.mxu0 %v254
  %785 = vmatprep.subr.mxu0 0.0
  %786 = vmatpush1.msra.mxu0 %v255
  %787 = vmatprep.subr.mxu0 0.0
  %788 = vmatpush1.msra.mxu0 %v256
  %789 = vmatprep.subr.mxu0 0.0
  %790 = vmatpush1.msra.mxu0 %v257
  %791 = vmatprep.subr.mxu0 0.0
  %792 = vmatpush1.msra.mxu0 %v258
  %793 = vmatprep.subr.mxu0 0.0
  %794 = vmatpush1.msra.mxu0 %v259
  %795 = vmatprep.subr.mxu0 0.0
  %796 = vmatpush1.msra.mxu0 %v260
  %797 = vmatprep.subr.mxu0 0.0
  %798 = vmatpush1.msra.mxu0 %v261
  %799 = vmatprep.subr.mxu0 0.0
  %800 = vmatpush1.msra.mxu0 %v262
  %801 = vmatprep.subr.mxu0 0.0
  %802 = vmatpush1.msra.mxu0 %v263
  %803 = vmatprep.subr.mxu0 0.0
  %804 = vmatpush1.msra.mxu0 %v264
  %805 = vmatprep.subr.mxu0 0.0
  %806 = vmatpush1.msra.mxu0 %v265
  %807 = vmatprep.subr.mxu0 0.0
  %808 = vmatpush1.msra.mxu0 %v266
  %809 = vmatprep.subr.mxu0 0.0
  %810 = vmatpush1.msra.mxu0 %v267
  %811 = vmatprep.subr.mxu0 0.0
  %812 = vmatpush1.msra.mxu0 %v268
  %813 = vmatprep.subr.mxu0 0.0
  %814 = vmatpush1.msra.mxu0 %v269
  %815 = vmatprep.subr.mxu0 0.0
  %816 = vmatpush1.msra.mxu0 %v270
  %817 = vmatprep.subr.mxu0 0.0
  %818 = vmatpush1.msra.mxu0 %v271
  %819 = vmatprep.subr.mxu0 0.0
  %820 = vmatpush1.msra.mxu0 %v272
  %821 = vmatprep.subr.mxu0 0.0
  %822 = vmatpush1.msra.mxu0 %v273
  %823 = vmatprep.subr.mxu0 0.0
  %824 = vmatpush1.msra.mxu0 %v274
  %825 = vmatprep.subr.mxu0 0.0
  %826 = vmatpush1.msra.mxu0 %v275
  %827 = vmatprep.subr.mxu0 0.0
  %828 = vmatpush1.msra.mxu0 %v276
  %829 = vmatprep.subr.mxu0 0.0
  %830 = vmatpush1.msra.mxu0 %v277
  %831 = vmatprep.subr.mxu0 0.0
  %832 = vmatpush1.msra.mxu0 %v278
  %833 = vmatprep.subr.mxu0 0.0
  %834 = vmatpush1.msra.mxu0 %v279
  %835 = vmatprep.subr.mxu0 0.0
  %836 = vmatpush1.msra.mxu0 %v280
  %837 = vmatprep.subr.mxu0 0.0
  %838 = vmatpush1.msra.mxu0 %v281
  %839 = vmatprep.subr.mxu0 0.0
  %840 = vmatpush1.msra.mxu0 %v282
  %841 = vmatprep.subr.mxu0 0.0
  %842 = vmatpush1.msra.mxu0 %v283
  %843 = vmatprep.subr.mxu0 0.0
  %844 = vmatpush1.msra.mxu0 %v284
  %845 = vmatprep.subr.mxu0 0.0
  %846 = vmatpush1.msra.mxu0 %v285
  %847 = vmatprep.mubr.f32.mxu0 %v29
  %848 = vmatmul.mubr.f32.gmra.mrb[0].mxu0 %v28
  %v849 = vpop.f32.mrb[0].mxu0
  %v850 = vadd.f32 %v780, %v849
  %v851 = vpop.f32.mrb[0].mxu0
  %852 = vdwg.mxu0
  %853 = vst [vmem:[%s3] sm:$0xff] %v850
  // Predicated region
  $region14: #{net_forward.5} parent=0 // pred_check
    _
  $region15: #{net_forward.5} parent=0 // pred_check_branch
    %855 = sbr.rel (0) target = $region17
  $region16: #{net_forward.5} parent=0 // pred_region
    _
  $region17: #{net_forward.5} parent=0 // pred_fallthru
    _
  // Predicated region
  $region18: #{net_forward.5} parent=0 // pred_check
    _
  $region19: #{net_forward.5} parent=0 // pred_check_branch
    %857 = sbr.rel (0) target = $region21
  $region20: #{net_forward.5} parent=0 // pred_region
    _
  $region21: #{net_forward.5} parent=0 // pred_fallthru
    _

</llo_original>
